<compile_context>
chip_gen: v5e
topology: v5e:2x2
jax: 0.10.0
libtpu: 0.0.40
codegen_flags: <defaults>
</compile_context>

<pallas_src>
import functools

import jax
import jax.numpy as jnp
from jax.experimental import pallas as pl

_BN_EPS = 1e-5


def _se_block_kernel(x298_ref, w1_ref, b1_ref, x295_ref, w2_ref,
                     gamma_ref, beta_ref, o_ref, *, n_valid):
    # conv2d97: 1x1 conv with bias == [1, C_se] @ [C_se, C_mid] + b1
    s = jnp.dot(x298_ref[...].astype(jnp.bfloat16), w1_ref[...],
                preferred_element_type=jnp.float32) + b1_ref[...]        # [1, C_mid]
    # sigmoid19 (EUP path); gate kept bf16 for the gating multiply / MXU feed.
    gate = jax.nn.sigmoid(s).astype(jnp.bfloat16)                        # [1, C_mid]

    # x301 = gate * x295, broadcast over the HW rows; stays bf16.
    x = x295_ref[...] * gate                                             # [HW_p, C_mid] bf16

    # conv2d98: 1x1 conv, no bias -- single 256-lane projection dot, f32 accumulation.
    y = jnp.dot(x, w2_ref[...], preferred_element_type=jnp.float32)      # [HW_p, C_out_p]

    # batchnorm2d58, training-mode batch stats over the n_valid real rows.
    # Padded rows of x are zero and conv2d98 has no bias, so padded rows of y are zero
    # and contribute nothing to sum(y); they are masked out of the centered variance.
    # TODO(synk): running_mean/running_var momentum update (training side effect) is not
    # modeled; it does not affect the forward output.
    inv_n = 1.0 / n_valid
    mean = jnp.sum(y, axis=0, keepdims=True) * inv_n                     # [1, C_out_p]
    d = y - mean
    rows = jax.lax.broadcasted_iota(jnp.int32, y.shape, 0)
    d = jnp.where(rows < n_valid, d, 0.0)
    var = jnp.sum(d * d, axis=0, keepdims=True) * inv_n                  # [1, C_out_p]
    scale = gamma_ref[...] * jax.lax.rsqrt(var + _BN_EPS)                # [1, C_out_p]
    shift = beta_ref[...] - mean * scale                                 # [1, C_out_p]
    o_ref[...] = y * scale + shift


def se_conv_bn(x298, x295, w1, b1, w2, gamma, beta):
    """x298: [1, C_se, 1, 1], x295: [1, C_mid, H, W] (NCHW). Returns [1, C_out, H, W]."""
    N, C_se = x298.shape[0], x298.shape[1]
    _, C_mid, H, W = x295.shape
    C_out = w2.shape[-1]
    HW = H * W
    assert N == 1, "kernel specialized for the module's N=1 forward"

    HW_p = pl.cdiv(HW, 8) * 8            # 49 -> 56 : sublane-dense f32 rows
    C_out_p = pl.cdiv(C_out, 128) * 128  # 232 -> 256: lane-dense, unmasked output stores
    pad_r = HW_p - HW
    pad_o = C_out_p - C_out

    # Channels-last activation matrices, N squeezed; bf16 cast folded into the transpose.
    x298_m = x298.reshape(1, C_se).astype(jnp.float32)
    x295_m = jnp.transpose(x295, (0, 2, 3, 1)).reshape(HW, C_mid).astype(jnp.bfloat16)
    x295_m = jnp.pad(x295_m, ((0, pad_r), (0, 0)))                        # zero rows

    # Weight prep: bf16 weights, zero-pad C_out so the output tile is a full 256 lanes.
    w1_b = w1.astype(jnp.bfloat16)                                        # [C_se, C_mid]
    b1_f = b1.astype(jnp.float32)                                         # [1, C_mid]
    w2_p = jnp.pad(w2, ((0, 0), (0, pad_o))).astype(jnp.bfloat16)         # [C_mid, C_out_p]
    gamma_p = jnp.pad(gamma.astype(jnp.float32), ((0, 0), (0, pad_o)))    # [1, C_out_p]
    beta_p = jnp.pad(beta.astype(jnp.float32), ((0, 0), (0, pad_o)))      # [1, C_out_p]

    kernel = functools.partial(_se_block_kernel, n_valid=HW)

    # Single invocation, no grid: total working set ~1 MB, fits VMEM on all generations;
    # every array is a full-extent block (default BlockSpecs) resident in VMEM.
    out = pl.pallas_call(
        kernel,
        out_shape=jax.ShapeDtypeStruct((HW_p, C_out_p), jnp.float32),
    )(x298_m, w1_b, b1_f, x295_m, w2_p, gamma_p, beta_p)

    # Drop row/channel padding, back to NCHW.
    out = out[:HW, :C_out]
    return jnp.transpose(out.reshape(1, H, W, C_out), (0, 3, 1, 2))


def _reference(x298, x295, w1, b1, w2, gamma, beta):
    """Pure-JAX f32 reference of the PyTorch forward (training-mode BN)."""
    N, C_se = x298.shape[0], x298.shape[1]
    s = x298.reshape(N, C_se) @ w1 + b1                                # [N, C_mid]
    gate = jax.nn.sigmoid(s)[:, :, None, None]                         # [N, C_mid, 1, 1]
    x301 = gate * x295                                                 # [N, C_mid, H, W]
    y = jnp.einsum("nchw,co->nohw", x301, w2)                          # [N, C_out, H, W]
    mean = jnp.mean(y, axis=(0, 2, 3), keepdims=True)
    var = jnp.mean((y - mean) ** 2, axis=(0, 2, 3), keepdims=True)
    g = gamma.reshape(1, -1, 1, 1)
    b = beta.reshape(1, -1, 1, 1)
    return (y - mean) * jax.lax.rsqrt(var + _BN_EPS) * g + b


if __name__ == "__main__":
    # Shapes implied by the module: C_se=58, C_mid=1392, C_out=232, spatial 7x7, N=1.
    N, C_se, C_mid, C_out, H, W = 1, 58, 1392, 232, 7, 7

    key = jax.random.PRNGKey(0)
    ks = jax.random.split(key, 7)
    x298 = jax.random.normal(ks[0], (N, C_se, 1, 1), jnp.float32)
    x295 = jax.random.normal(ks[1], (N, C_mid, H, W), jnp.float32)

    # Deterministic parameter init (synthetic; matches parameter shapes of M.__init__).
    w1 = jax.random.normal(ks[2], (C_se, C_mid), jnp.float32) / jnp.sqrt(C_se)     # conv2d97.weight.T
    b1 = 0.01 * jax.random.normal(ks[3], (1, C_mid), jnp.float32)                  # conv2d97.bias
    w2 = jax.random.normal(ks[4], (C_mid, C_out), jnp.float32) / jnp.sqrt(C_mid)   # conv2d98.weight.T
    gamma = 1.0 + 0.1 * jax.random.normal(ks[5], (1, C_out), jnp.float32)          # bn.weight
    beta = 0.1 * jax.random.normal(ks[6], (1, C_out), jnp.float32)                 # bn.bias

    out = se_conv_bn(x298, x295, w1, b1, w2, gamma, beta)
    jax.block_until_ready(out)

    ref = _reference(x298, x295, w1, b1, w2, gamma, beta)
    assert out.shape == (N, C_out, H, W)
    # Tolerance bounded by bf16 feeds to the MXU (x298/w1, x295/gate, w2); BN output is
    # O(1), so 3e-2 comfortably covers bf16 rounding.
    assert jnp.allclose(out, ref, atol=3e-2, rtol=3e-2)

    print("KERNEL_OK")
</pallas_src>

<mosaic_0001>
module attributes {stable_mosaic.version = 11 : i64} {
  func.func @_se_block_kernel(%arg0: memref<1x58xf32, #tpu.memory_space<vmem>>, %arg1: memref<58x1392xbf16, #tpu.memory_space<vmem>>, %arg2: memref<1x1392xf32, #tpu.memory_space<vmem>>, %arg3: memref<56x1392xbf16, #tpu.memory_space<vmem>>, %arg4: memref<1392x256xbf16, #tpu.memory_space<vmem>>, %arg5: memref<1x256xf32, #tpu.memory_space<vmem>>, %arg6: memref<1x256xf32, #tpu.memory_space<vmem>>, %arg7: memref<56x256xf32, #tpu.memory_space<vmem>>) attributes {dimension_semantics = [], scalar_prefetch = 0 : i64, scratch_operands = 0 : i64, tpu.core_type = #tpu.core_type<tc>} {
    %c0 = arith.constant 0 : index
    %c0_0 = arith.constant 0 : index
    %0 = vector.load %arg0[%c0, %c0_0] : memref<1x58xf32, #tpu.memory_space<vmem>>, vector<1x58xf32>
    %1 = arith.truncf %0 : vector<1x58xf32> to vector<1x58xbf16>
    %c0_1 = arith.constant 0 : index
    %c0_2 = arith.constant 0 : index
    %2 = vector.load %arg1[%c0_1, %c0_2] : memref<58x1392xbf16, #tpu.memory_space<vmem>>, vector<58x1392xbf16>
    %cst = arith.constant dense<0.000000e+00> : vector<1x1392xf32>
    %3 = tpu.matmul %1, %2, %cst {dimension_numbers = #tpu.dot_dimension_numbers<[1], [0], [0], [1], [0, 0, 1, 1], [], []>} : vector<1x58xbf16>, vector<58x1392xbf16>, vector<1x1392xf32> -> vector<1x1392xf32>
    %c0_3 = arith.constant 0 : index
    %c0_4 = arith.constant 0 : index
    %4 = vector.load %arg2[%c0_3, %c0_4] : memref<1x1392xf32, #tpu.memory_space<vmem>>, vector<1x1392xf32>
    %5 = arith.addf %3, %4 : vector<1x1392xf32>
    %6 = arith.negf %5 : vector<1x1392xf32>
    %7 = math.exp %6 : vector<1x1392xf32>
    %cst_5 = arith.constant 1.000000e+00 : f32
    %8 = vector.broadcast %cst_5 : f32 to vector<1x1392xf32>
    %9 = arith.addf %8, %7 : vector<1x1392xf32>
    %10 = arith.divf %8, %9 : vector<1x1392xf32>
    %11 = arith.truncf %10 : vector<1x1392xf32> to vector<1x1392xbf16>
    %c0_6 = arith.constant 0 : index
    %c0_7 = arith.constant 0 : index
    %12 = vector.load %arg3[%c0_6, %c0_7] : memref<56x1392xbf16, #tpu.memory_space<vmem>>, vector<56x1392xbf16>
    %13 = vector.broadcast %11 : vector<1x1392xbf16> to vector<56x1392xbf16>
    %14 = arith.mulf %12, %13 : vector<56x1392xbf16>
    %c0_8 = arith.constant 0 : index
    %c0_9 = arith.constant 0 : index
    %15 = vector.load %arg4[%c0_8, %c0_9] : memref<1392x256xbf16, #tpu.memory_space<vmem>>, vector<1392x256xbf16>
    %cst_10 = arith.constant dense<0.000000e+00> : vector<56x256xf32>
    %16 = tpu.matmul %14, %15, %cst_10 {dimension_numbers = #tpu.dot_dimension_numbers<[1], [0], [0], [1], [0, 0, 1, 1], [], []>} : vector<56x1392xbf16>, vector<1392x256xbf16>, vector<56x256xf32> -> vector<56x256xf32>
    %cst_11 = arith.constant dense<0.000000e+00> : vector<256xf32>
    %17 = vector.multi_reduction <add>, %16, %cst_11 [0] : vector<56x256xf32> to vector<256xf32>
    %18 = vector.shape_cast %17 : vector<256xf32> to vector<1x256xf32>
    %cst_12 = arith.constant 0.0204081628 : f32
    %19 = vector.broadcast %cst_12 : f32 to vector<1x256xf32>
    %20 = arith.mulf %18, %19 : vector<1x256xf32>
    %21 = vector.broadcast %20 : vector<1x256xf32> to vector<56x256xf32>
    %22 = arith.subf %16, %21 : vector<56x256xf32>
    %23 = tpu.iota {dimensions = array<i32: 0>} : vector<56x256xi32>
    %c49_i32 = arith.constant 49 : i32
    %24 = vector.broadcast %c49_i32 : i32 to vector<56x256xi32>
    %25 = arith.cmpi slt, %23, %24 : vector<56x256xi32>
    %cst_13 = arith.constant 0.000000e+00 : f32
    %26 = vector.broadcast %cst_13 : f32 to vector<56x256xf32>
    %27 = arith.select %25, %22, %26 : vector<56x256xi1>, vector<56x256xf32>
    %28 = arith.mulf %27, %27 : vector<56x256xf32>
    %cst_14 = arith.constant dense<0.000000e+00> : vector<256xf32>
    %29 = vector.multi_reduction <add>, %28, %cst_14 [0] : vector<56x256xf32> to vector<256xf32>
    %30 = vector.shape_cast %29 : vector<256xf32> to vector<1x256xf32>
    %cst_15 = arith.constant 0.0204081628 : f32
    %31 = vector.broadcast %cst_15 : f32 to vector<1x256xf32>
    %32 = arith.mulf %30, %31 : vector<1x256xf32>
    %c0_16 = arith.constant 0 : index
    %c0_17 = arith.constant 0 : index
    %33 = vector.load %arg5[%c0_16, %c0_17] : memref<1x256xf32, #tpu.memory_space<vmem>>, vector<1x256xf32>
    %cst_18 = arith.constant 9.99999974E-6 : f32
    %34 = vector.broadcast %cst_18 : f32 to vector<1x256xf32>
    %35 = arith.addf %32, %34 : vector<1x256xf32>
    %36 = math.rsqrt %35 : vector<1x256xf32>
    %37 = arith.mulf %33, %36 : vector<1x256xf32>
    %c0_19 = arith.constant 0 : index
    %c0_20 = arith.constant 0 : index
    %38 = vector.load %arg6[%c0_19, %c0_20] : memref<1x256xf32, #tpu.memory_space<vmem>>, vector<1x256xf32>
    %39 = arith.mulf %20, %37 : vector<1x256xf32>
    %40 = arith.subf %38, %39 : vector<1x256xf32>
    %41 = vector.broadcast %37 : vector<1x256xf32> to vector<56x256xf32>
    %42 = arith.mulf %16, %41 : vector<56x256xf32>
    %43 = vector.broadcast %40 : vector<1x256xf32> to vector<56x256xf32>
    %44 = arith.addf %42, %43 : vector<56x256xf32>
    %c0_21 = arith.constant 0 : index
    %c0_22 = arith.constant 0 : index
    %45 = vector.load %arg7[%c0_21, %c0_22] : memref<56x256xf32, #tpu.memory_space<vmem>>, vector<56x256xf32>
    tpu.vector_store %arg7[%c0_21, %c0_22], %44 {strides = array<i32>} : memref<56x256xf32, #tpu.memory_space<vmem>>, vector<56x256xf32>,
    return
  }
}

</mosaic_0001>

<llo_original>
// kernel: tpu_custom_call.1
$region0: #{tpu_custom_call.1}
  #allocation0 [shape = 'u32[]', space=smem, size = 0x4, offset = 0x4, fixed_abs, tag = 'smem constant byte address 0x4 - core index']
  #allocation1 [shape = 'u32[72,128]{1,0:T(1,128)}', space=vmem, size = 0x9000, scoped, tag = 'internal scratch']
  %s0 = inlined_call_operand.hbm [shape: f32[1,58], index: 0, kind: input, shape index: {}]
  %s1 = inlined_call_operand.hbm [shape: bf16[58,1392], index: 1, kind: input, shape index: {}]
  %s2 = inlined_call_operand.hbm [shape: f32[1,1392], index: 2, kind: input, shape index: {}]
  %s3 = inlined_call_operand.hbm [shape: bf16[56,1392], index: 3, kind: input, shape index: {}]
  %s4 = inlined_call_operand.hbm [shape: bf16[1392,256], index: 4, kind: input, shape index: {}]
  %s5 = inlined_call_operand.vmem [shape: f32[1,256], index: 5, kind: input, shape index: {}]
  %s6 = inlined_call_operand.vmem [shape: f32[1,256], index: 6, kind: input, shape index: {}]
  %s7 = inlined_call_operand.hbm [shape: f32[56,256], index: 7, kind: output, shape index: {}]
  %s8 = sld [smem:[#allocation0]]
  $region58: #{tpu_custom_call.1} parent=0
    _
  %s10 = ssub.s32 1, %s8
  %s11 = scalar_select 0, %s10, %s8
  $region1: #{tpu_custom_call.1} parent=0
    #allocation2 [shape = 'u8[512]{0}', space=vmem, size = 0x400, scoped, tag = 'input window, operand 0, single buffered']
    #allocation3 [shape = 's32[1]{0}', space=sflag, size = 0x4, scoped, tag = 'scoped memory for tpu_custom_call.1']
    #allocation4 [shape = 's32[1]{0}', space=sflag, size = 0x4, scoped, tag = 'scoped memory for tpu_custom_call.1']
    #allocation5 [shape = 'u8[180224]{0}', space=vmem, size = 0x2c000, scoped, tag = 'input window, operand 1, single buffered']
    #allocation6 [shape = 's32[1]{0}', space=sflag, size = 0x4, scoped, tag = 'scoped memory for tpu_custom_call.1']
    #allocation7 [shape = 'u8[5632]{0}', space=vmem, size = 0x1800, scoped, tag = 'input window, operand 2, single buffered']
    #allocation8 [shape = 'u8[157696]{0}', space=vmem, size = 0x26800, scoped, tag = 'input window, operand 3, single buffered']
    #allocation9 [shape = 's32[1]{0}', space=sflag, size = 0x4, scoped, tag = 'scoped memory for tpu_custom_call.1']
    #allocation10 [shape = 'u8[712704]{0}', space=vmem, size = 0xae000, scoped, tag = 'input window, operand 4, single buffered']
    #allocation11 [shape = 'u8[57344]{0}', space=vmem, size = 0xe000, scoped, tag = 'output window, operand 0, single buffered']
    %12 = vsyncpa [#allocation3], 0
    %13 = vsyncpa [#allocation6], 0
    %14 = vsyncpa [#allocation9], 0
    %15 = vsyncpa [#allocation4], 0
    // Predicated region
    $region2: #{tpu_custom_call.1} parent=1 // pred_check
      _
    $region3: #{tpu_custom_call.1} parent=1 // pred_check_branch
      %17 = sbr.rel (0) target = $region5
    $region4: #{tpu_custom_call.1} parent=1 // pred_region
      %19 = vsyncadd [#allocation3], 0
      %s21 = sshll.u32 %s0, 4
      %s22 = int_to_ptr.hbm [resolvable:$true] %s21
      %s23 = sshll.u32 [#allocation2], 4
      %s24 = int_to_ptr.vmem [resolvable:$true] %s23
      %26 = dma.hbm_to_vmem [thread:$0]  %s22, 16, %s24, [#allocation3]
    $region5: #{tpu_custom_call.1} parent=1 // pred_fallthru
      _
    // Predicated region
    $region6: #{tpu_custom_call.1} parent=1 // pred_check
      _
    $region7: #{tpu_custom_call.1} parent=1 // pred_check_branch
      %28 = sbr.rel (0) target = $region9
    $region8: #{tpu_custom_call.1} parent=1 // pred_region
      %30 = vsyncadd [#allocation6], 0
      %s31 = sshll.u32 %s1, 4
      %s32 = int_to_ptr.hbm [resolvable:$true] %s31
      %s33 = sshll.u32 [#allocation5], 4
      %s34 = int_to_ptr.vmem [resolvable:$true] %s33
      %39 = dma.hbm_to_vmem [thread:$0]  %s32, 5632, %s34, [#allocation6], 704, 704, 44
    $region9: #{tpu_custom_call.1} parent=1 // pred_fallthru
      _
    // Predicated region
    $region10: #{tpu_custom_call.1} parent=1 // pred_check
      _
    $region11: #{tpu_custom_call.1} parent=1 // pred_check_branch
      %41 = sbr.rel (0) target = $region13
    $region12: #{tpu_custom_call.1} parent=1 // pred_region
      %43 = vsyncadd [#allocation6], 0
      %s45 = sshll.u32 %s2, 4
      %s46 = int_to_ptr.hbm [resolvable:$true] %s45
      %s47 = sshll.u32 [#allocation7], 4
      %s48 = int_to_ptr.vmem [resolvable:$true] %s47
      %50 = dma.hbm_to_vmem [thread:$0]  %s46, 176, %s48, [#allocation6]
    $region13: #{tpu_custom_call.1} parent=1 // pred_fallthru
      _
    // Predicated region
    $region14: #{tpu_custom_call.1} parent=1 // pred_check
      _
    $region15: #{tpu_custom_call.1} parent=1 // pred_check_branch
      %52 = sbr.rel (0) target = $region17
    $region16: #{tpu_custom_call.1} parent=1 // pred_region
      %54 = vsyncadd [#allocation9], 0
      %s55 = sshll.u32 %s3, 4
      %s56 = int_to_ptr.hbm [resolvable:$true] %s55
      %s57 = sshll.u32 [#allocation8], 4
      %s58 = int_to_ptr.vmem [resolvable:$true] %s57
      %63 = dma.hbm_to_vmem [thread:$0]  %s56, 4928, %s58, [#allocation9], 704, 704, 44
    $region17: #{tpu_custom_call.1} parent=1 // pred_fallthru
      _
    // Predicated region
    $region18: #{tpu_custom_call.1} parent=1 // pred_check
      _
    $region19: #{tpu_custom_call.1} parent=1 // pred_check_branch
      %65 = sbr.rel (0) target = $region21
    $region20: #{tpu_custom_call.1} parent=1 // pred_region
      %67 = vsyncadd [#allocation9], 0
      %s68 = sshll.u32 %s4, 4
      %s69 = int_to_ptr.hbm [resolvable:$true] %s68
      %s70 = sshll.u32 [#allocation10], 4
      %s71 = int_to_ptr.vmem [resolvable:$true] %s70
      %76 = dma.hbm_to_vmem [thread:$0]  %s69, 22272, %s71, [#allocation9], 128, 128, 8
    $region21: #{tpu_custom_call.1} parent=1 // pred_fallthru
      _
    // Predicated region
    $region22: #{tpu_custom_call.1} parent=1 // pred_check
      _
    $region23: #{tpu_custom_call.1} parent=1 // pred_check_branch
      %78 = sbr.rel (0) target = $region25
    $region24: #{tpu_custom_call.1} parent=1 // pred_region
      _
    $region25: #{tpu_custom_call.1} parent=1 // pred_fallthru
      _
    // Predicated region
    $region26: #{tpu_custom_call.1} parent=1 // pred_check
      _
    $region27: #{tpu_custom_call.1} parent=1 // pred_check_branch
      %80 = sbr.rel (0) target = $region29
    $region28: #{tpu_custom_call.1} parent=1 // pred_region
      _
    $region29: #{tpu_custom_call.1} parent=1 // pred_fallthru
      _
    // Predicated region
    $region30: #{tpu_custom_call.1} parent=1 // pred_check
      _
    $region31: #{tpu_custom_call.1} parent=1 // pred_check_branch
      %82 = sbr.rel (0) target = $region33
    $region32: #{tpu_custom_call.1} parent=1 // pred_region
      %84 = dma.done [#allocation3], 16
    $region33: #{tpu_custom_call.1} parent=1 // pred_fallthru
      _
    // Predicated region
    $region34: #{tpu_custom_call.1} parent=1 // pred_check
      _
    $region35: #{tpu_custom_call.1} parent=1 // pred_check_branch
      %86 = sbr.rel (0) target = $region37
    $region36: #{tpu_custom_call.1} parent=1 // pred_region
      %88 = dma.done [#allocation6], 5632
    $region37: #{tpu_custom_call.1} parent=1 // pred_fallthru
      _
    // Predicated region
    $region38: #{tpu_custom_call.1} parent=1 // pred_check
      _
    $region39: #{tpu_custom_call.1} parent=1 // pred_check_branch
      %90 = sbr.rel (0) target = $region41
    $region40: #{tpu_custom_call.1} parent=1 // pred_region
      %92 = dma.done [#allocation6], 176
    $region41: #{tpu_custom_call.1} parent=1 // pred_fallthru
      _
    // Predicated region
    $region42: #{tpu_custom_call.1} parent=1 // pred_check
      _
    $region43: #{tpu_custom_call.1} parent=1 // pred_check_branch
      %94 = sbr.rel (0) target = $region45
    $region44: #{tpu_custom_call.1} parent=1 // pred_region
      %96 = dma.done [#allocation9], 4928
    $region45: #{tpu_custom_call.1} parent=1 // pred_fallthru
      _
    // Predicated region
    $region46: #{tpu_custom_call.1} parent=1 // pred_check
      _
    $region47: #{tpu_custom_call.1} parent=1 // pred_check_branch
      %98 = sbr.rel (0) target = $region49
    $region48: #{tpu_custom_call.1} parent=1 // pred_region
      %100 = dma.done [#allocation9], 22272
    $region49: #{tpu_custom_call.1} parent=1 // pred_fallthru
      _
    %v102 = vld [vmem:[#allocation2] sm:$0x1]
    %v103 = vpack.c.bf16 %v102, %v102
    %v104 = vld [vmem:[#allocation5] sm:$0xff]
    %v105 = vld [vmem:[#allocation5 + $0x8] sm:$0xff]
    %v106 = vld [vmem:[#allocation5 + $0x10] sm:$0xff]
    %v107 = vld [vmem:[#allocation5 + $0x18] sm:$0xff]
    %v108 = vld [vmem:[#allocation5 + $0x20] sm:$0xff]
    %v109 = vld [vmem:[#allocation5 + $0x28] sm:$0xf]
    %v110 = vld [vmem:[#allocation5 + $0x2c] sm:$0xff]
    %v111 = vld [vmem:[#allocation5 + $0x34] sm:$0xff]
    %v112 = vld [vmem:[#allocation5 + $0x3c] sm:$0xff]
    %v113 = vld [vmem:[#allocation5 + $0x44] sm:$0xff]
    %v114 = vld [vmem:[#allocation5 + $0x4c] sm:$0xff]
    %v115 = vld [vmem:[#allocation5 + $0x54] sm:$0xf]
    %v116 = vld [vmem:[#allocation5 + $0x58] sm:$0xff]
    %v117 = vld [vmem:[#allocation5 + $0x60] sm:$0xff]
    %v118 = vld [vmem:[#allocation5 + $0x68] sm:$0xff]
    %v119 = vld [vmem:[#allocation5 + $0x70] sm:$0xff]
    %v120 = vld [vmem:[#allocation5 + $0x78] sm:$0xff]
    %v121 = vld [vmem:[#allocation5 + $0x80] sm:$0xf]
    %v122 = vld [vmem:[#allocation5 + $0x84] sm:$0xff]
    %v123 = vld [vmem:[#allocation5 + $0x8c] sm:$0xff]
    %v124 = vld [vmem:[#allocation5 + $0x94] sm:$0xff]
    %v125 = vld [vmem:[#allocation5 + $0x9c] sm:$0xff]
    %v126 = vld [vmem:[#allocation5 + $0xa4] sm:$0xff]
    %v127 = vld [vmem:[#allocation5 + $0xac] sm:$0xf]
    %v128 = vld [vmem:[#allocation5 + $0xb0] sm:$0xff]
    %v129 = vld [vmem:[#allocation5 + $0xb8] sm:$0xff]
    %v130 = vld [vmem:[#allocation5 + $0xc0] sm:$0xff]
    %v131 = vld [vmem:[#allocation5 + $0xc8] sm:$0xff]
    %v132 = vld [vmem:[#allocation5 + $0xd0] sm:$0xff]
    %v133 = vld [vmem:[#allocation5 + $0xd8] sm:$0xf]
    %v134 = vld [vmem:[#allocation5 + $0xdc] sm:$0xff]
    %v135 = vld [vmem:[#allocation5 + $0xe4] sm:$0xff]
    %v136 = vld [vmem:[#allocation5 + $0xec] sm:$0xff]
    %v137 = vld [vmem:[#allocation5 + $0xf4] sm:$0xff]
    %v138 = vld [vmem:[#allocation5 + $0xfc] sm:$0xff]
    %v139 = vld [vmem:[#allocation5 + $0x104] sm:$0xf]
    %v140 = vld [vmem:[#allocation5 + $0x108] sm:$0xff]
    %v141 = vld [vmem:[#allocation5 + $0x110] sm:$0xff]
    %v142 = vld [vmem:[#allocation5 + $0x118] sm:$0xff]
    %v143 = vld [vmem:[#allocation5 + $0x120] sm:$0xff]
    %v144 = vld [vmem:[#allocation5 + $0x128] sm:$0xff]
    %v145 = vld [vmem:[#allocation5 + $0x130] sm:$0xf]
    %v146 = vld [vmem:[#allocation5 + $0x134] sm:$0x11]
    %v147 = vld [vmem:[#allocation5 + $0x13c] sm:$0x11]
    %v148 = vld [vmem:[#allocation5 + $0x144] sm:$0x11]
    %v149 = vld [vmem:[#allocation5 + $0x14c] sm:$0x11]
    %v150 = vld [vmem:[#allocation5 + $0x154] sm:$0x11]
    %v151 = vld [vmem:[#allocation5 + $0x15c] sm:$0x1]
    %v152 = vld [vmem:[#allocation7] sm:$0xff]
    %v153 = vld [vmem:[#allocation7 + $0x8] sm:$0x7]
    %v202 = vunpack.c.l.b16 %v104
    %v203 = vunpack.c.h.b16 %v104
    %v204 = vunpack.c.l.b16 %v105
    %v205 = vunpack.c.h.b16 %v105
    %v206 = vunpack.c.l.b16 %v106
    %v207 = vunpack.c.h.b16 %v106
    %v208 = vunpack.c.l.b16 %v107
    %v209 = vunpack.c.h.b16 %v107
    %v210 = vunpack.c.l.b16 %v108
    %v211 = vunpack.c.h.b16 %v108
    %v212 = vunpack.c.l.b16 %v109
    %v213 = vunpack.c.l.b16 %v110
    %v214 = vunpack.c.h.b16 %v110
    %v215 = vunpack.c.l.b16 %v111
    %v216 = vunpack.c.h.b16 %v111
    %v217 = vunpack.c.l.b16 %v112
    %v218 = vunpack.c.h.b16 %v112
    %v219 = vunpack.c.l.b16 %v113
    %v220 = vunpack.c.h.b16 %v113
    %v221 = vunpack.c.l.b16 %v114
    %v222 = vunpack.c.h.b16 %v114
    %v223 = vunpack.c.l.b16 %v115
    %v224 = vunpack.c.l.b16 %v116
    %v225 = vunpack.c.h.b16 %v116
    %v226 = vunpack.c.l.b16 %v117
    %v227 = vunpack.c.h.b16 %v117
    %v228 = vunpack.c.l.b16 %v118
    %v229 = vunpack.c.h.b16 %v118
    %v230 = vunpack.c.l.b16 %v119
    %v231 = vunpack.c.h.b16 %v119
    %v232 = vunpack.c.l.b16 %v120
    %v233 = vunpack.c.h.b16 %v120
    %v234 = vunpack.c.l.b16 %v121
    %v235 = vunpack.c.l.b16 %v122
    %v236 = vunpack.c.h.b16 %v122
    %v237 = vunpack.c.l.b16 %v123
    %v238 = vunpack.c.h.b16 %v123
    %v239 = vunpack.c.l.b16 %v124
    %v240 = vunpack.c.h.b16 %v124
    %v241 = vunpack.c.l.b16 %v125
    %v242 = vunpack.c.h.b16 %v125
    %v243 = vunpack.c.l.b16 %v126
    %v244 = vunpack.c.h.b16 %v126
    %v245 = vunpack.c.l.b16 %v127
    %v246 = vunpack.c.l.b16 %v128
    %v247 = vunpack.c.h.b16 %v128
    %v248 = vunpack.c.l.b16 %v129
    %v249 = vunpack.c.h.b16 %v129
    %v250 = vunpack.c.l.b16 %v130
    %v251 = vunpack.c.h.b16 %v130
    %v252 = vunpack.c.l.b16 %v131
    %v253 = vunpack.c.h.b16 %v131
    %v254 = vunpack.c.l.b16 %v132
    %v255 = vunpack.c.h.b16 %v132
    %v256 = vunpack.c.l.b16 %v133
    %v257 = vunpack.c.l.b16 %v134
    %v258 = vunpack.c.h.b16 %v134
    %v259 = vunpack.c.l.b16 %v135
    %v260 = vunpack.c.h.b16 %v135
    %v261 = vunpack.c.l.b16 %v136
    %v262 = vunpack.c.h.b16 %v136
    %v263 = vunpack.c.l.b16 %v137
    %v264 = vunpack.c.h.b16 %v137
    %v265 = vunpack.c.l.b16 %v138
    %v266 = vunpack.c.h.b16 %v138
    %v267 = vunpack.c.l.b16 %v139
    %v268 = vunpack.c.l.b16 %v140
    %v269 = vunpack.c.h.b16 %v140
    %v270 = vunpack.c.l.b16 %v141
    %v271 = vunpack.c.h.b16 %v141
    %v272 = vunpack.c.l.b16 %v142
    %v273 = vunpack.c.h.b16 %v142
    %v274 = vunpack.c.l.b16 %v143
    %v275 = vunpack.c.h.b16 %v143
    %v276 = vunpack.c.l.b16 %v144
    %v277 = vunpack.c.h.b16 %v144
    %v278 = vunpack.c.l.b16 %v145
    %v279 = vunpack.c.l.b16 %v146
    %v280 = vunpack.c.h.b16 %v146
    %v281 = vunpack.c.l.b16 %v147
    %v282 = vunpack.c.h.b16 %v147
    %v283 = vunpack.c.l.b16 %v148
    %v284 = vunpack.c.h.b16 %v148
    %v285 = vunpack.c.l.b16 %v149
    %v286 = vunpack.c.h.b16 %v149
    %v287 = vunpack.c.l.b16 %v150
    %v288 = vunpack.c.h.b16 %v150
    %v289 = vunpack.c.l.b16 %v151
    %v290 = vpack.c.b16 %v213, %v202
    %v291 = vpack.c.b16 %v214, %v203
    %v292 = vpack.c.b16 %v215, %v204
    %v293 = vpack.c.b16 %v216, %v205
    %v294 = vpack.c.b16 %v217, %v206
    %v295 = vpack.c.b16 %v218, %v207
    %v296 = vpack.c.b16 %v219, %v208
    %v297 = vpack.c.b16 %v220, %v209
    %v298 = vpack.c.b16 %v221, %v210
    %v299 = vpack.c.b16 %v222, %v211
    %v300 = vpack.c.b16 %v223, %v212
    %v301 = vpack.c.b16 %v235, %v224
    %v302 = vpack.c.b16 %v236, %v225
    %v303 = vpack.c.b16 %v237, %v226
    %v304 = vpack.c.b16 %v238, %v227
    %v305 = vpack.c.b16 %v239, %v228
    %v306 = vpack.c.b16 %v240, %v229
    %v307 = vpack.c.b16 %v241, %v230
    %v308 = vpack.c.b16 %v242, %v231
    %v309 = vpack.c.b16 %v243, %v232
    %v310 = vpack.c.b16 %v244, %v233
    %v311 = vpack.c.b16 %v245, %v234
    %v312 = vpack.c.b16 %v257, %v246
    %v313 = vpack.c.b16 %v258, %v247
    %v314 = vpack.c.b16 %v259, %v248
    %v315 = vpack.c.b16 %v260, %v249
    %v316 = vpack.c.b16 %v261, %v250
    %v317 = vpack.c.b16 %v262, %v251
    %v318 = vpack.c.b16 %v263, %v252
    %v319 = vpack.c.b16 %v264, %v253
    %v320 = vpack.c.b16 %v265, %v254
    %v321 = vpack.c.b16 %v266, %v255
    %v322 = vpack.c.b16 %v267, %v256
    %v323 = vpack.c.b16 %v279, %v268
    %v324 = vpack.c.b16 %v280, %v269
    %v325 = vpack.c.b16 %v281, %v270
    %v326 = vpack.c.b16 %v282, %v271
    %v327 = vpack.c.b16 %v283, %v272
    %v328 = vpack.c.b16 %v284, %v273
    %v329 = vpack.c.b16 %v285, %v274
    %v330 = vpack.c.b16 %v286, %v275
    %v331 = vpack.c.b16 %v287, %v276
    %v332 = vpack.c.b16 %v288, %v277
    %v333 = vpack.c.b16 %v289, %v278
    %v369 = vperm.slane %v152, 0
    %v370 = vperm.slane %v152, 1
    %v371 = vperm.slane %v152, 2
    %v372 = vperm.slane %v152, 3
    %v373 = vperm.slane %v152, 4
    %v374 = vperm.slane %v152, 5
    %v375 = vperm.slane %v152, 6
    %v376 = vperm.slane %v152, 7
    %v377 = vperm.slane %v153, 0
    %v378 = vperm.slane %v153, 1
    %v379 = vperm.slane %v153, 2
    %vm391 = vcmask 474112
    %v393 = vsel %vm391, %v103, 0
    %vm395 = vcmask 1044480
    %v397 = vsel %vm395, %v323, 0
    %v400 = vsel %vm395, %v324, 0
    %v403 = vsel %vm395, %v325, 0
    %v406 = vsel %vm395, %v326, 0
    %v409 = vsel %vm395, %v327, 0
    %v412 = vsel %vm395, %v328, 0
    %v415 = vsel %vm395, %v329, 0
    %v418 = vsel %vm395, %v330, 0
    %v421 = vsel %vm395, %v331, 0
    %v424 = vsel %vm395, %v332, 0
    %v427 = vsel %vm395, %v333, 0
    %429 = vmatpush.bf16.msra.mxu0 0
    %430 = vmatpush.bf16.msra.mxu0 0
    %431 = vmatpush.bf16.msra.mxu0 0
    %432 = vmatpush.bf16.msra.mxu0 0
    %433 = vmatpush.bf16.msra.mxu0 %v397
    %434 = vmatpush.bf16.msra.mxu0 %v312
    %435 = vmatpush.bf16.msra.mxu0 %v301
    %436 = vmatpush.bf16.msra.mxu0 %v290
    %437 = vmatmul.bf16.gmra.mxu0 %v393
    %v438 = vpop.f32.mrf.mxu0
    %v439 = vadd.f32 %v369, %v438
    %v440 = vpop.f32.mrf.mxu0
    %441 = vdwg.mxu0
    %442 = vmatpush.bf16.msra.mxu0 0
    %443 = vmatpush.bf16.msra.mxu0 0
    %444 = vmatpush.bf16.msra.mxu0 0
    %445 = vmatpush.bf16.msra.mxu0 0
    %446 = vmatpush.bf16.msra.mxu0 %v400
    %447 = vmatpush.bf16.msra.mxu0 %v313
    %448 = vmatpush.bf16.msra.mxu0 %v302
    %449 = vmatpush.bf16.msra.mxu0 %v291
    %450 = vmatmul.bf16.gmra.mxu0 %v393
    %v451 = vpop.f32.mrf.mxu0
    %v452 = vadd.f32 %v370, %v451
    %v453 = vpop.f32.mrf.mxu0
    %454 = vdwg.mxu0
    %455 = vmatpush.bf16.msra.mxu0 0
    %456 = vmatpush.bf16.msra.mxu0 0
    %457 = vmatpush.bf16.msra.mxu0 0
    %458 = vmatpush.bf16.msra.mxu0 0
    %459 = vmatpush.bf16.msra.mxu0 %v403
    %460 = vmatpush.bf16.msra.mxu0 %v314
    %461 = vmatpush.bf16.msra.mxu0 %v303
    %462 = vmatpush.bf16.msra.mxu0 %v292
    %463 = vmatmul.bf16.gmra.mxu0 %v393
    %v464 = vpop.f32.mrf.mxu0
    %v465 = vadd.f32 %v371, %v464
    %v466 = vpop.f32.mrf.mxu0
    %467 = vdwg.mxu0
    %468 = vmatpush.bf16.msra.mxu0 0
    %469 = vmatpush.bf16.msra.mxu0 0
    %470 = vmatpush.bf16.msra.mxu0 0
    %471 = vmatpush.bf16.msra.mxu0 0
    %472 = vmatpush.bf16.msra.mxu0 %v406
    %473 = vmatpush.bf16.msra.mxu0 %v315
    %474 = vmatpush.bf16.msra.mxu0 %v304
    %475 = vmatpush.bf16.msra.mxu0 %v293
    %476 = vmatmul.bf16.gmra.mxu0 %v393
    %v477 = vpop.f32.mrf.mxu0
    %v478 = vadd.f32 %v372, %v477
    %v479 = vpop.f32.mrf.mxu0
    %480 = vdwg.mxu0
    %481 = vmatpush.bf16.msra.mxu0 0
    %482 = vmatpush.bf16.msra.mxu0 0
    %483 = vmatpush.bf16.msra.mxu0 0
    %484 = vmatpush.bf16.msra.mxu0 0
    %485 = vmatpush.bf16.msra.mxu0 %v409
    %486 = vmatpush.bf16.msra.mxu0 %v316
    %487 = vmatpush.bf16.msra.mxu0 %v305
    %488 = vmatpush.bf16.msra.mxu0 %v294
    %489 = vmatmul.bf16.gmra.mxu0 %v393
    %v490 = vpop.f32.mrf.mxu0
    %v491 = vadd.f32 %v373, %v490
    %v492 = vpop.f32.mrf.mxu0
    %493 = vdwg.mxu0
    %494 = vmatpush.bf16.msra.mxu0 0
    %495 = vmatpush.bf16.msra.mxu0 0
    %496 = vmatpush.bf16.msra.mxu0 0
    %497 = vmatpush.bf16.msra.mxu0 0
    %498 = vmatpush.bf16.msra.mxu0 %v412
    %499 = vmatpush.bf16.msra.mxu0 %v317
    %500 = vmatpush.bf16.msra.mxu0 %v306
    %501 = vmatpush.bf16.msra.mxu0 %v295
    %502 = vmatmul.bf16.gmra.mxu0 %v393
    %v503 = vpop.f32.mrf.mxu0
    %v504 = vadd.f32 %v374, %v503
    %v505 = vpop.f32.mrf.mxu0
    %506 = vdwg.mxu0
    %507 = vmatpush.bf16.msra.mxu0 0
    %508 = vmatpush.bf16.msra.mxu0 0
    %509 = vmatpush.bf16.msra.mxu0 0
    %510 = vmatpush.bf16.msra.mxu0 0
    %511 = vmatpush.bf16.msra.mxu0 %v415
    %512 = vmatpush.bf16.msra.mxu0 %v318
    %513 = vmatpush.bf16.msra.mxu0 %v307
    %514 = vmatpush.bf16.msra.mxu0 %v296
    %515 = vmatmul.bf16.gmra.mxu0 %v393
    %v516 = vpop.f32.mrf.mxu0
    %v517 = vadd.f32 %v375, %v516
    %v518 = vpop.f32.mrf.mxu0
    %519 = vdwg.mxu0
    %520 = vmatpush.bf16.msra.mxu0 0
    %521 = vmatpush.bf16.msra.mxu0 0
    %522 = vmatpush.bf16.msra.mxu0 0
    %523 = vmatpush.bf16.msra.mxu0 0
    %524 = vmatpush.bf16.msra.mxu0 %v418
    %525 = vmatpush.bf16.msra.mxu0 %v319
    %526 = vmatpush.bf16.msra.mxu0 %v308
    %527 = vmatpush.bf16.msra.mxu0 %v297
    %528 = vmatmul.bf16.gmra.mxu0 %v393
    %v529 = vpop.f32.mrf.mxu0
    %v530 = vadd.f32 %v376, %v529
    %v531 = vpop.f32.mrf.mxu0
    %532 = vdwg.mxu0
    %533 = vmatpush.bf16.msra.mxu0 0
    %534 = vmatpush.bf16.msra.mxu0 0
    %535 = vmatpush.bf16.msra.mxu0 0
    %536 = vmatpush.bf16.msra.mxu0 0
    %537 = vmatpush.bf16.msra.mxu0 %v421
    %538 = vmatpush.bf16.msra.mxu0 %v320
    %539 = vmatpush.bf16.msra.mxu0 %v309
    %540 = vmatpush.bf16.msra.mxu0 %v298
    %541 = vmatmul.bf16.gmra.mxu0 %v393
    %v542 = vpop.f32.mrf.mxu0
    %v543 = vadd.f32 %v377, %v542
    %v544 = vpop.f32.mrf.mxu0
    %545 = vdwg.mxu0
    %546 = vmatpush.bf16.msra.mxu0 0
    %547 = vmatpush.bf16.msra.mxu0 0
    %548 = vmatpush.bf16.msra.mxu0 0
    %549 = vmatpush.bf16.msra.mxu0 0
    %550 = vmatpush.bf16.msra.mxu0 %v424
    %551 = vmatpush.bf16.msra.mxu0 %v321
    %552 = vmatpush.bf16.msra.mxu0 %v310
    %553 = vmatpush.bf16.msra.mxu0 %v299
    %554 = vmatmul.bf16.gmra.mxu0 %v393
    %v555 = vpop.f32.mrf.mxu0
    %v556 = vadd.f32 %v378, %v555
    %v557 = vpop.f32.mrf.mxu0
    %558 = vdwg.mxu0
    %559 = vmatpush.bf16.msra.mxu0 0
    %560 = vmatpush.bf16.msra.mxu0 0
    %561 = vmatpush.bf16.msra.mxu0 0
    %562 = vmatpush.bf16.msra.mxu0 0
    %563 = vmatpush.bf16.msra.mxu0 %v427
    %564 = vmatpush.bf16.msra.mxu0 %v322
    %565 = vmatpush.bf16.msra.mxu0 %v311
    %566 = vmatpush.bf16.msra.mxu0 %v300
    %567 = vmatmul.bf16.gmra.mxu0 %v393
    %v568 = vpop.f32.mrf.mxu0
    %v569 = vadd.f32 %v379, %v568
    %v570 = vpop.f32.mrf.mxu0
    %571 = vdwg.mxu0
    %v572 = vxor.u32 %v439, 2147483648
    %v573 = vxor.u32 %v452, 2147483648
    %v574 = vxor.u32 %v465, 2147483648
    %v575 = vxor.u32 %v478, 2147483648
    %v576 = vxor.u32 %v491, 2147483648
    %v577 = vxor.u32 %v504, 2147483648
    %v578 = vxor.u32 %v517, 2147483648
    %v579 = vxor.u32 %v530, 2147483648
    %v580 = vxor.u32 %v543, 2147483648
    %v581 = vxor.u32 %v556, 2147483648
    %v582 = vxor.u32 %v569, 2147483648
    %v583 = vmul.f32 %v572, 1.442695
    %v584 = vpow.pop %v583
    %v585 = vmul.f32 %v573, 1.442695
    %v586 = vpow.pop %v585
    %v587 = vmul.f32 %v574, 1.442695
    %v588 = vpow.pop %v587
    %v589 = vmul.f32 %v575, 1.442695
    %v590 = vpow.pop %v589
    %v591 = vmul.f32 %v576, 1.442695
    %v592 = vpow.pop %v591
    %v593 = vmul.f32 %v577, 1.442695
    %v594 = vpow.pop %v593
    %v595 = vmul.f32 %v578, 1.442695
    %v596 = vpow.pop %v595
    %v597 = vmul.f32 %v579, 1.442695
    %v598 = vpow.pop %v597
    %v599 = vmul.f32 %v580, 1.442695
    %v600 = vpow.pop %v599
    %v601 = vmul.f32 %v581, 1.442695
    %v602 = vpow.pop %v601
    %v603 = vmul.f32 %v582, 1.442695
    %v604 = vpow.pop %v603
    %v605 = vadd.f32 %v584, 1.0
    %v606 = vadd.f32 %v586, 1.0
    %v607 = vadd.f32 %v588, 1.0
    %v608 = vadd.f32 %v590, 1.0
    %v609 = vadd.f32 %v592, 1.0
    %v610 = vadd.f32 %v594, 1.0
    %v611 = vadd.f32 %v596, 1.0
    %v612 = vadd.f32 %v598, 1.0
    %v613 = vadd.f32 %v600, 1.0
    %v614 = vadd.f32 %v602, 1.0
    %v615 = vadd.f32 %v604, 1.0
    %v616 = vrcp.pop %v605
    %v617 = vmul.f32 %v605, %v616
    %v618 = vsub.f32 1.0, %v617
    %v619 = vmul.f32 %v616, %v618
    %v620 = vadd.f32 %v616, %v619
    %vm621 = vweird.f32 %v605
    %vm622 = vweird.f32 %v616
    %vm623 = vmor %vm621, %vm622
    %v624 = vsel %vm623, %v616, %v620
    %v625 = vand.u32 2147483647, %v605
    %vm626 = vcmp.eq.f32.partialorder %v625, 8.507059e+37
    %v627 = vand.u32 %v605, 2147483648
    %v628 = vor.u32 1.1754944e-38, %v627
    %v629 = vsel %vm626, %v628, %v624
    %v630 = vmul.f32 1.0, %v629
    %v631 = vrcp.pop %v606
    %v632 = vmul.f32 %v606, %v631
    %v633 = vsub.f32 1.0, %v632
    %v634 = vmul.f32 %v631, %v633
    %v635 = vadd.f32 %v631, %v634
    %vm636 = vweird.f32 %v606
    %vm637 = vweird.f32 %v631
    %vm638 = vmor %vm636, %vm637
    %v639 = vsel %vm638, %v631, %v635
    %v640 = vand.u32 2147483647, %v606
    %vm641 = vcmp.eq.f32.partialorder %v640, 8.507059e+37
    %v642 = vand.u32 %v606, 2147483648
    %v643 = vor.u32 1.1754944e-38, %v642
    %v644 = vsel %vm641, %v643, %v639
    %v645 = vmul.f32 1.0, %v644
    %v646 = vrcp.pop %v607
    %v647 = vmul.f32 %v607, %v646
    %v648 = vsub.f32 1.0, %v647
    %v649 = vmul.f32 %v646, %v648
    %v650 = vadd.f32 %v646, %v649
    %vm651 = vweird.f32 %v607
    %vm652 = vweird.f32 %v646
    %vm653 = vmor %vm651, %vm652
    %v654 = vsel %vm653, %v646, %v650
    %v655 = vand.u32 2147483647, %v607
    %vm656 = vcmp.eq.f32.partialorder %v655, 8.507059e+37
    %v657 = vand.u32 %v607, 2147483648
    %v658 = vor.u32 1.1754944e-38, %v657
    %v659 = vsel %vm656, %v658, %v654
    %v660 = vmul.f32 1.0, %v659
    %v661 = vrcp.pop %v608
    %v662 = vmul.f32 %v608, %v661
    %v663 = vsub.f32 1.0, %v662
    %v664 = vmul.f32 %v661, %v663
    %v665 = vadd.f32 %v661, %v664
    %vm666 = vweird.f32 %v608
    %vm667 = vweird.f32 %v661
    %vm668 = vmor %vm666, %vm667
    %v669 = vsel %vm668, %v661, %v665
    %v670 = vand.u32 2147483647, %v608
    %vm671 = vcmp.eq.f32.partialorder %v670, 8.507059e+37
    %v672 = vand.u32 %v608, 2147483648
    %v673 = vor.u32 1.1754944e-38, %v672
    %v674 = vsel %vm671, %v673, %v669
    %v675 = vmul.f32 1.0, %v674
    %v676 = vrcp.pop %v609
    %v677 = vmul.f32 %v609, %v676
    %v678 = vsub.f32 1.0, %v677
    %v679 = vmul.f32 %v676, %v678
    %v680 = vadd.f32 %v676, %v679
    %vm681 = vweird.f32 %v609
    %vm682 = vweird.f32 %v676
    %vm683 = vmor %vm681, %vm682
    %v684 = vsel %vm683, %v676, %v680
    %v685 = vand.u32 2147483647, %v609
    %vm686 = vcmp.eq.f32.partialorder %v685, 8.507059e+37
    %v687 = vand.u32 %v609, 2147483648
    %v688 = vor.u32 1.1754944e-38, %v687
    %v689 = vsel %vm686, %v688, %v684
    %v690 = vmul.f32 1.0, %v689
    %v691 = vrcp.pop %v610
    %v692 = vmul.f32 %v610, %v691
    %v693 = vsub.f32 1.0, %v692
    %v694 = vmul.f32 %v691, %v693
    %v695 = vadd.f32 %v691, %v694
    %vm696 = vweird.f32 %v610
    %vm697 = vweird.f32 %v691
    %vm698 = vmor %vm696, %vm697
    %v699 = vsel %vm698, %v691, %v695
    %v700 = vand.u32 2147483647, %v610
    %vm701 = vcmp.eq.f32.partialorder %v700, 8.507059e+37
    %v702 = vand.u32 %v610, 2147483648
    %v703 = vor.u32 1.1754944e-38, %v702
    %v704 = vsel %vm701, %v703, %v699
    %v705 = vmul.f32 1.0, %v704
    %v706 = vrcp.pop %v611
    %v707 = vmul.f32 %v611, %v706
    %v708 = vsub.f32 1.0, %v707
    %v709 = vmul.f32 %v706, %v708
    %v710 = vadd.f32 %v706, %v709
    %vm711 = vweird.f32 %v611
    %vm712 = vweird.f32 %v706
    %vm713 = vmor %vm711, %vm712
    %v714 = vsel %vm713, %v706, %v710
    %v715 = vand.u32 2147483647, %v611
    %vm716 = vcmp.eq.f32.partialorder %v715, 8.507059e+37
    %v717 = vand.u32 %v611, 2147483648
    %v718 = vor.u32 1.1754944e-38, %v717
    %v719 = vsel %vm716, %v718, %v714
    %v720 = vmul.f32 1.0, %v719
    %v721 = vrcp.pop %v612
    %v722 = vmul.f32 %v612, %v721
    %v723 = vsub.f32 1.0, %v722
    %v724 = vmul.f32 %v721, %v723
    %v725 = vadd.f32 %v721, %v724
    %vm726 = vweird.f32 %v612
    %vm727 = vweird.f32 %v721
    %vm728 = vmor %vm726, %vm727
    %v729 = vsel %vm728, %v721, %v725
    %v730 = vand.u32 2147483647, %v612
    %vm731 = vcmp.eq.f32.partialorder %v730, 8.507059e+37
    %v732 = vand.u32 %v612, 2147483648
    %v733 = vor.u32 1.1754944e-38, %v732
    %v734 = vsel %vm731, %v733, %v729
    %v735 = vmul.f32 1.0, %v734
    %v736 = vrcp.pop %v613
    %v737 = vmul.f32 %v613, %v736
    %v738 = vsub.f32 1.0, %v737
    %v739 = vmul.f32 %v736, %v738
    %v740 = vadd.f32 %v736, %v739
    %vm741 = vweird.f32 %v613
    %vm742 = vweird.f32 %v736
    %vm743 = vmor %vm741, %vm742
    %v744 = vsel %vm743, %v736, %v740
    %v745 = vand.u32 2147483647, %v613
    %vm746 = vcmp.eq.f32.partialorder %v745, 8.507059e+37
    %v747 = vand.u32 %v613, 2147483648
    %v748 = vor.u32 1.1754944e-38, %v747
    %v749 = vsel %vm746, %v748, %v744
    %v750 = vmul.f32 1.0, %v749
    %v751 = vrcp.pop %v614
    %v752 = vmul.f32 %v614, %v751
    %v753 = vsub.f32 1.0, %v752
    %v754 = vmul.f32 %v751, %v753
    %v755 = vadd.f32 %v751, %v754
    %vm756 = vweird.f32 %v614
    %vm757 = vweird.f32 %v751
    %vm758 = vmor %vm756, %vm757
    %v759 = vsel %vm758, %v751, %v755
    %v760 = vand.u32 2147483647, %v614
    %vm761 = vcmp.eq.f32.partialorder %v760, 8.507059e+37
    %v762 = vand.u32 %v614, 2147483648
    %v763 = vor.u32 1.1754944e-38, %v762
    %v764 = vsel %vm761, %v763, %v759
    %v765 = vmul.f32 1.0, %v764
    %v766 = vrcp.pop %v615
    %v767 = vmul.f32 %v615, %v766
    %v768 = vsub.f32 1.0, %v767
    %v769 = vmul.f32 %v766, %v768
    %v770 = vadd.f32 %v766, %v769
    %vm771 = vweird.f32 %v615
    %vm772 = vweird.f32 %v766
    %vm773 = vmor %vm771, %vm772
    %v774 = vsel %vm773, %v766, %v770
    %v775 = vand.u32 2147483647, %v615
    %vm776 = vcmp.eq.f32.partialorder %v775, 8.507059e+37
    %v777 = vand.u32 %v615, 2147483648
    %v778 = vor.u32 1.1754944e-38, %v777
    %v779 = vsel %vm776, %v778, %v774
    %v780 = vmul.f32 1.0, %v779
    %v781 = vpack.c.bf16 %v645, %v630
    %v782 = vpack.c.bf16 %v675, %v660
    %v783 = vpack.c.bf16 %v705, %v690
    %v784 = vpack.c.bf16 %v735, %v720
    %v785 = vpack.c.bf16 %v765, %v750
    %v786 = vpack.c.bf16 %v780, %v780
    %v787 = vld [vmem:[#allocation8] sm:$0xff]
    %v788 = vld [vmem:[#allocation8 + $0x8] sm:$0xff]
    %v789 = vld [vmem:[#allocation8 + $0x10] sm:$0xff]
    %v790 = vld [vmem:[#allocation8 + $0x18] sm:$0xff]
    %v791 = vld [vmem:[#allocation8 + $0x20] sm:$0xff]
    %v792 = vld [vmem:[#allocation8 + $0x28] sm:$0xf]
    %v793 = vld [vmem:[#allocation8 + $0x2c] sm:$0xff]
    %v794 = vld [vmem:[#allocation8 + $0x34] sm:$0xff]
    %v795 = vld [vmem:[#allocation8 + $0x3c] sm:$0xff]
    %v796 = vld [vmem:[#allocation8 + $0x44] sm:$0xff]
    %v797 = vld [vmem:[#allocation8 + $0x4c] sm:$0xff]
    %v798 = vld [vmem:[#allocation8 + $0x54] sm:$0xf]
    %v799 = vld [vmem:[#allocation8 + $0x58] sm:$0xff]
    %v800 = vld [vmem:[#allocation8 + $0x60] sm:$0xff]
    %v801 = vld [vmem:[#allocation8 + $0x68] sm:$0xff]
    %v802 = vld [vmem:[#allocation8 + $0x70] sm:$0xff]
    %v803 = vld [vmem:[#allocation8 + $0x78] sm:$0xff]
    %v804 = vld [vmem:[#allocation8 + $0x80] sm:$0xf]
    %v805 = vld [vmem:[#allocation8 + $0x84] sm:$0xff]
    %v806 = vld [vmem:[#allocation8 + $0x8c] sm:$0xff]
    %v807 = vld [vmem:[#allocation8 + $0x94] sm:$0xff]
    %v808 = vld [vmem:[#allocation8 + $0x9c] sm:$0xff]
    %v809 = vld [vmem:[#allocation8 + $0xa4] sm:$0xff]
    %v810 = vld [vmem:[#allocation8 + $0xac] sm:$0xf]
    %v811 = vld [vmem:[#allocation8 + $0xb0] sm:$0xff]
    %v812 = vld [vmem:[#allocation8 + $0xb8] sm:$0xff]
    %v813 = vld [vmem:[#allocation8 + $0xc0] sm:$0xff]
    %v814 = vld [vmem:[#allocation8 + $0xc8] sm:$0xff]
    %v815 = vld [vmem:[#allocation8 + $0xd0] sm:$0xff]
    %v816 = vld [vmem:[#allocation8 + $0xd8] sm:$0xf]
    %v817 = vld [vmem:[#allocation8 + $0xdc] sm:$0xff]
    %v818 = vld [vmem:[#allocation8 + $0xe4] sm:$0xff]
    %v819 = vld [vmem:[#allocation8 + $0xec] sm:$0xff]
    %v820 = vld [vmem:[#allocation8 + $0xf4] sm:$0xff]
    %v821 = vld [vmem:[#allocation8 + $0xfc] sm:$0xff]
    %v822 = vld [vmem:[#allocation8 + $0x104] sm:$0xf]
    %v823 = vld [vmem:[#allocation8 + $0x108] sm:$0xff]
    %v824 = vld [vmem:[#allocation8 + $0x110] sm:$0xff]
    %v825 = vld [vmem:[#allocation8 + $0x118] sm:$0xff]
    %v826 = vld [vmem:[#allocation8 + $0x120] sm:$0xff]
    %v827 = vld [vmem:[#allocation8 + $0x128] sm:$0xff]
    %v828 = vld [vmem:[#allocation8 + $0x130] sm:$0xf]
    %v835 = vunpack.c.l.b16 %v781
    %v836 = vunpack.c.h.b16 %v781
    %v837 = vunpack.c.l.b16 %v782
    %v838 = vunpack.c.h.b16 %v782
    %v839 = vunpack.c.l.b16 %v783
    %v840 = vunpack.c.h.b16 %v783
    %v841 = vunpack.c.l.b16 %v784
    %v842 = vunpack.c.h.b16 %v784
    %v843 = vunpack.c.l.b16 %v785
    %v844 = vunpack.c.h.b16 %v785
    %v845 = vunpack.c.l.b16 %v786
    %v846 = vpack.c.b16 %v835, %v835
    %v847 = vpack.c.b16 %v836, %v836
    %v848 = vpack.c.b16 %v837, %v837
    %v849 = vpack.c.b16 %v838, %v838
    %v850 = vpack.c.b16 %v839, %v839
    %v851 = vpack.c.b16 %v840, %v840
    %v852 = vpack.c.b16 %v841, %v841
    %v853 = vpack.c.b16 %v842, %v842
    %v854 = vpack.c.b16 %v843, %v843
    %v855 = vpack.c.b16 %v844, %v844
    %v856 = vpack.c.b16 %v845, %v845
    %v858 = vpack.i.b16 %v846, %v846
    %v860 = vperm.slane %v858, 0
    %v862 = vpack.i.b16 %v847, %v847
    %v864 = vperm.slane %v862, 0
    %v866 = vpack.i.b16 %v848, %v848
    %v868 = vperm.slane %v866, 0
    %v870 = vpack.i.b16 %v849, %v849
    %v872 = vperm.slane %v870, 0
    %v874 = vpack.i.b16 %v850, %v850
    %v876 = vperm.slane %v874, 0
    %v878 = vpack.i.b16 %v851, %v851
    %v880 = vperm.slane %v878, 0
    %v882 = vpack.i.b16 %v852, %v852
    %v884 = vperm.slane %v882, 0
    %v886 = vpack.i.b16 %v853, %v853
    %v888 = vperm.slane %v886, 0
    %v890 = vpack.i.b16 %v854, %v854
    %v892 = vperm.slane %v890, 0
    %v894 = vpack.i.b16 %v855, %v855
    %v896 = vperm.slane %v894, 0
    %v898 = vpack.i.b16 %v856, %v856
    %v900 = vperm.slane %v898, 0
    %v901 = vunpack.c.l.bf16 %v787
    %v902 = vunpack.c.h.bf16 %v787
    %v903 = vunpack.c.l.bf16 %v788
    %v904 = vunpack.c.h.bf16 %v788
    %v905 = vunpack.c.l.bf16 %v789
    %v906 = vunpack.c.h.bf16 %v789
    %v907 = vunpack.c.l.bf16 %v790
    %v908 = vunpack.c.h.bf16 %v790
    %v909 = vunpack.c.l.bf16 %v791
    %v910 = vunpack.c.h.bf16 %v791
    %v911 = vunpack.c.l.bf16 %v792
    %v912 = vunpack.c.l.bf16 %v793
    %v913 = vunpack.c.h.bf16 %v793
    %v914 = vunpack.c.l.bf16 %v794
    %v915 = vunpack.c.h.bf16 %v794
    %v916 = vunpack.c.l.bf16 %v795
    %v917 = vunpack.c.h.bf16 %v795
    %v918 = vunpack.c.l.bf16 %v796
    %v919 = vunpack.c.h.bf16 %v796
    %v920 = vunpack.c.l.bf16 %v797
    %v921 = vunpack.c.h.bf16 %v797
    %v922 = vunpack.c.l.bf16 %v798
    %v923 = vunpack.c.l.bf16 %v799
    %v924 = vunpack.c.h.bf16 %v799
    %v925 = vunpack.c.l.bf16 %v800
    %v926 = vunpack.c.h.bf16 %v800
    %v927 = vunpack.c.l.bf16 %v801
    %v928 = vunpack.c.h.bf16 %v801
    %v929 = vunpack.c.l.bf16 %v802
    %v930 = vunpack.c.h.bf16 %v802
    %v931 = vunpack.c.l.bf16 %v803
    %v932 = vunpack.c.h.bf16 %v803
    %v933 = vunpack.c.l.bf16 %v804
    %v934 = vunpack.c.l.bf16 %v805
    %v935 = vunpack.c.h.bf16 %v805
    %v936 = vunpack.c.l.bf16 %v806
    %v937 = vunpack.c.h.bf16 %v806
    %v938 = vunpack.c.l.bf16 %v807
    %v939 = vunpack.c.h.bf16 %v807
    %v940 = vunpack.c.l.bf16 %v808
    %v941 = vunpack.c.h.bf16 %v808
    %v942 = vunpack.c.l.bf16 %v809
    %v943 = vunpack.c.h.bf16 %v809
    %v944 = vunpack.c.l.bf16 %v810
    %v945 = vunpack.c.l.bf16 %v811
    %v946 = vunpack.c.h.bf16 %v811
    %v947 = vunpack.c.l.bf16 %v812
    %v948 = vunpack.c.h.bf16 %v812
    %v949 = vunpack.c.l.bf16 %v813
    %v950 = vunpack.c.h.bf16 %v813
    %v951 = vunpack.c.l.bf16 %v814
    %v952 = vunpack.c.h.bf16 %v814
    %v953 = vunpack.c.l.bf16 %v815
    %v954 = vunpack.c.h.bf16 %v815
    %v955 = vunpack.c.l.bf16 %v816
    %v956 = vunpack.c.l.bf16 %v817
    %v957 = vunpack.c.h.bf16 %v817
    %v958 = vunpack.c.l.bf16 %v818
    %v959 = vunpack.c.h.bf16 %v818
    %v960 = vunpack.c.l.bf16 %v819
    %v961 = vunpack.c.h.bf16 %v819
    %v962 = vunpack.c.l.bf16 %v820
    %v963 = vunpack.c.h.bf16 %v820
    %v964 = vunpack.c.l.bf16 %v821
    %v965 = vunpack.c.h.bf16 %v821
    %v966 = vunpack.c.l.bf16 %v822
    %v967 = vunpack.c.l.bf16 %v823
    %v968 = vunpack.c.h.bf16 %v823
    %v969 = vunpack.c.l.bf16 %v824
    %v970 = vunpack.c.h.bf16 %v824
    %v971 = vunpack.c.l.bf16 %v825
    %v972 = vunpack.c.h.bf16 %v825
    %v973 = vunpack.c.l.bf16 %v826
    %v974 = vunpack.c.h.bf16 %v826
    %v975 = vunpack.c.l.bf16 %v827
    %v976 = vunpack.c.h.bf16 %v827
    %v977 = vunpack.c.l.bf16 %v828
    %v978 = vunpack.c.l.bf16 %v860
    %v979 = vunpack.c.l.bf16 %v864
    %v980 = vunpack.c.l.bf16 %v868
    %v981 = vunpack.c.l.bf16 %v872
    %v982 = vunpack.c.l.bf16 %v876
    %v983 = vunpack.c.l.bf16 %v880
    %v984 = vunpack.c.l.bf16 %v884
    %v985 = vunpack.c.l.bf16 %v888
    %v986 = vunpack.c.l.bf16 %v892
    %v987 = vunpack.c.l.bf16 %v896
    %v988 = vunpack.c.l.bf16 %v900
    %v989 = vmul.f32 %v901, %v978
    %v990 = vmul.f32 %v902, %v979
    %v991 = vmul.f32 %v903, %v980
    %v992 = vmul.f32 %v904, %v981
    %v993 = vmul.f32 %v905, %v982
    %v994 = vmul.f32 %v906, %v983
    %v995 = vmul.f32 %v907, %v984
    %v996 = vmul.f32 %v908, %v985
    %v997 = vmul.f32 %v909, %v986
    %v998 = vmul.f32 %v910, %v987
    %v999 = vmul.f32 %v911, %v988
    %v1000 = vmul.f32 %v912, %v978
    %v1001 = vmul.f32 %v913, %v979
    %v1002 = vmul.f32 %v914, %v980
    %v1003 = vmul.f32 %v915, %v981
    %v1004 = vmul.f32 %v916, %v982
    %v1005 = vmul.f32 %v917, %v983
    %v1006 = vmul.f32 %v918, %v984
    %v1007 = vmul.f32 %v919, %v985
    %v1008 = vmul.f32 %v920, %v986
    %v1009 = vmul.f32 %v921, %v987
    %v1010 = vmul.f32 %v922, %v988
    %v1011 = vmul.f32 %v923, %v978
    %v1012 = vmul.f32 %v924, %v979
    %v1013 = vmul.f32 %v925, %v980
    %v1014 = vmul.f32 %v926, %v981
    %v1015 = vmul.f32 %v927, %v982
    %v1016 = vmul.f32 %v928, %v983
    %v1017 = vmul.f32 %v929, %v984
    %v1018 = vmul.f32 %v930, %v985
    %v1019 = vmul.f32 %v931, %v986
    %v1020 = vmul.f32 %v932, %v987
    %v1021 = vmul.f32 %v933, %v988
    %v1022 = vmul.f32 %v934, %v978
    %v1023 = vmul.f32 %v935, %v979
    %v1024 = vmul.f32 %v936, %v980
    %v1025 = vmul.f32 %v937, %v981
    %v1026 = vmul.f32 %v938, %v982
    %v1027 = vmul.f32 %v939, %v983
    %v1028 = vmul.f32 %v940, %v984
    %v1029 = vmul.f32 %v941, %v985
    %v1030 = vmul.f32 %v942, %v986
    %v1031 = vmul.f32 %v943, %v987
    %v1032 = vmul.f32 %v944, %v988
    %v1033 = vmul.f32 %v945, %v978
    %v1034 = vmul.f32 %v946, %v979
    %v1035 = vmul.f32 %v947, %v980
    %v1036 = vmul.f32 %v948, %v981
    %v1037 = vmul.f32 %v949, %v982
    %v1038 = vmul.f32 %v950, %v983
    %v1039 = vmul.f32 %v951, %v984
    %v1040 = vmul.f32 %v952, %v985
    %v1041 = vmul.f32 %v953, %v986
    %v1042 = vmul.f32 %v954, %v987
    %v1043 = vmul.f32 %v955, %v988
    %v1044 = vmul.f32 %v956, %v978
    %v1045 = vmul.f32 %v957, %v979
    %v1046 = vmul.f32 %v958, %v980
    %v1047 = vmul.f32 %v959, %v981
    %v1048 = vmul.f32 %v960, %v982
    %v1049 = vmul.f32 %v961, %v983
    %v1050 = vmul.f32 %v962, %v984
    %v1051 = vmul.f32 %v963, %v985
    %v1052 = vmul.f32 %v964, %v986
    %v1053 = vmul.f32 %v965, %v987
    %v1054 = vmul.f32 %v966, %v988
    %v1055 = vmul.f32 %v967, %v978
    %v1056 = vmul.f32 %v968, %v979
    %v1057 = vmul.f32 %v969, %v980
    %v1058 = vmul.f32 %v970, %v981
    %v1059 = vmul.f32 %v971, %v982
    %v1060 = vmul.f32 %v972, %v983
    %v1061 = vmul.f32 %v973, %v984
    %v1062 = vmul.f32 %v974, %v985
    %v1063 = vmul.f32 %v975, %v986
    %v1064 = vmul.f32 %v976, %v987
    %v1065 = vmul.f32 %v977, %v988
    %v1066 = vpack.c.bf16 %v1000, %v989
    %v1067 = vpack.c.bf16 %v1001, %v990
    %v1068 = vpack.c.bf16 %v1002, %v991
    %v1069 = vpack.c.bf16 %v1003, %v992
    %v1070 = vpack.c.bf16 %v1004, %v993
    %v1071 = vpack.c.bf16 %v1005, %v994
    %v1072 = vpack.c.bf16 %v1006, %v995
    %v1073 = vpack.c.bf16 %v1007, %v996
    %v1074 = vpack.c.bf16 %v1008, %v997
    %v1075 = vpack.c.bf16 %v1009, %v998
    %v1076 = vpack.c.bf16 %v1010, %v999
    %v1077 = vpack.c.bf16 %v1022, %v1011
    %v1078 = vpack.c.bf16 %v1023, %v1012
    %v1079 = vpack.c.bf16 %v1024, %v1013
    %v1080 = vpack.c.bf16 %v1025, %v1014
    %v1081 = vpack.c.bf16 %v1026, %v1015
    %v1082 = vpack.c.bf16 %v1027, %v1016
    %v1083 = vpack.c.bf16 %v1028, %v1017
    %v1084 = vpack.c.bf16 %v1029, %v1018
    %v1085 = vpack.c.bf16 %v1030, %v1019
    %v1086 = vpack.c.bf16 %v1031, %v1020
    %v1087 = vpack.c.bf16 %v1032, %v1021
    %v1088 = vpack.c.bf16 %v1044, %v1033
    %v1089 = vpack.c.bf16 %v1045, %v1034
    %v1090 = vpack.c.bf16 %v1046, %v1035
    %v1091 = vpack.c.bf16 %v1047, %v1036
    %v1092 = vpack.c.bf16 %v1048, %v1037
    %v1093 = vpack.c.bf16 %v1049, %v1038
    %v1094 = vpack.c.bf16 %v1050, %v1039
    %v1095 = vpack.c.bf16 %v1051, %v1040
    %v1096 = vpack.c.bf16 %v1052, %v1041
    %v1097 = vpack.c.bf16 %v1053, %v1042
    %v1098 = vpack.c.bf16 %v1054, %v1043
    %v1099 = vpack.c.bf16 %v1055, %v1055
    %v1100 = vpack.c.bf16 %v1056, %v1056
    %v1101 = vpack.c.bf16 %v1057, %v1057
    %v1102 = vpack.c.bf16 %v1058, %v1058
    %v1103 = vpack.c.bf16 %v1059, %v1059
    %v1104 = vpack.c.bf16 %v1060, %v1060
    %v1105 = vpack.c.bf16 %v1061, %v1061
    %v1106 = vpack.c.bf16 %v1062, %v1062
    %v1107 = vpack.c.bf16 %v1063, %v1063
    %v1108 = vpack.c.bf16 %v1064, %v1064
    %v1109 = vpack.c.bf16 %v1065, %v1065
    %v1110 = vld [vmem:[#allocation10] sm:$0xff]
    %v1111 = vld [vmem:[#allocation10 + $0x8] sm:$0xff]
    %v1112 = vld [vmem:[#allocation10 + $0x10] sm:$0xff]
    %v1113 = vld [vmem:[#allocation10 + $0x18] sm:$0xff]
    %v1114 = vld [vmem:[#allocation10 + $0x20] sm:$0xff]
    %v1115 = vld [vmem:[#allocation10 + $0x28] sm:$0xff]
    %v1116 = vld [vmem:[#allocation10 + $0x30] sm:$0xff]
    %v1117 = vld [vmem:[#allocation10 + $0x38] sm:$0xff]
    %v1118 = vld [vmem:[#allocation10 + $0x40] sm:$0xff]
    %v1119 = vld [vmem:[#allocation10 + $0x48] sm:$0xff]
    %v1120 = vld [vmem:[#allocation10 + $0x50] sm:$0xff]
    %v1121 = vld [vmem:[#allocation10 + $0x58] sm:$0xff]
    %v1122 = vld [vmem:[#allocation10 + $0x60] sm:$0xff]
    %v1123 = vld [vmem:[#allocation10 + $0x68] sm:$0xff]
    %v1124 = vld [vmem:[#allocation10 + $0x70] sm:$0xff]
    %v1125 = vld [vmem:[#allocation10 + $0x78] sm:$0xff]
    %v1126 = vld [vmem:[#allocation10 + $0x80] sm:$0xff]
    %v1127 = vld [vmem:[#allocation10 + $0x88] sm:$0xff]
    %v1128 = vld [vmem:[#allocation10 + $0x90] sm:$0xff]
    %v1129 = vld [vmem:[#allocation10 + $0x98] sm:$0xff]
    %v1130 = vld [vmem:[#allocation10 + $0xa0] sm:$0xff]
    %v1131 = vld [vmem:[#allocation10 + $0xa8] sm:$0xff]
    %v1132 = vld [vmem:[#allocation10 + $0xb0] sm:$0xff]
    %v1133 = vld [vmem:[#allocation10 + $0xb8] sm:$0xff]
    %v1134 = vld [vmem:[#allocation10 + $0xc0] sm:$0xff]
    %v1135 = vld [vmem:[#allocation10 + $0xc8] sm:$0xff]
    %v1136 = vld [vmem:[#allocation10 + $0xd0] sm:$0xff]
    %v1137 = vld [vmem:[#allocation10 + $0xd8] sm:$0xff]
    %v1138 = vld [vmem:[#allocation10 + $0xe0] sm:$0xff]
    %v1139 = vld [vmem:[#allocation10 + $0xe8] sm:$0xff]
    %v1140 = vld [vmem:[#allocation10 + $0xf0] sm:$0xff]
    %v1141 = vld [vmem:[#allocation10 + $0xf8] sm:$0xff]
    %v1142 = vld [vmem:[#allocation10 + $0x100] sm:$0xff]
    %v1143 = vld [vmem:[#allocation10 + $0x108] sm:$0xff]
    %v1144 = vld [vmem:[#allocation10 + $0x110] sm:$0xff]
    %v1145 = vld [vmem:[#allocation10 + $0x118] sm:$0xff]
    %v1146 = vld [vmem:[#allocation10 + $0x120] sm:$0xff]
    %v1147 = vld [vmem:[#allocation10 + $0x128] sm:$0xff]
    %v1148 = vld [vmem:[#allocation10 + $0x130] sm:$0xff]
    %v1149 = vld [vmem:[#allocation10 + $0x138] sm:$0xff]
    %v1150 = vld [vmem:[#allocation10 + $0x140] sm:$0xff]
    %v1151 = vld [vmem:[#allocation10 + $0x148] sm:$0xff]
    %v1152 = vld [vmem:[#allocation10 + $0x150] sm:$0xff]
    %v1153 = vld [vmem:[#allocation10 + $0x158] sm:$0xff]
    %v1154 = vld [vmem:[#allocation10 + $0x160] sm:$0xff]
    %v1155 = vld [vmem:[#allocation10 + $0x168] sm:$0xff]
    %v1156 = vld [vmem:[#allocation10 + $0x170] sm:$0xff]
    %v1157 = vld [vmem:[#allocation10 + $0x178] sm:$0xff]
    %v1158 = vld [vmem:[#allocation10 + $0x180] sm:$0xff]
    %v1159 = vld [vmem:[#allocation10 + $0x188] sm:$0xff]
    %v1160 = vld [vmem:[#allocation10 + $0x190] sm:$0xff]
    %v1161 = vld [vmem:[#allocation10 + $0x198] sm:$0xff]
    %v1162 = vld [vmem:[#allocation10 + $0x1a0] sm:$0xff]
    %v1163 = vld [vmem:[#allocation10 + $0x1a8] sm:$0xff]
    %v1164 = vld [vmem:[#allocation10 + $0x1b0] sm:$0xff]
    %v1165 = vld [vmem:[#allocation10 + $0x1b8] sm:$0xff]
    %v1166 = vld [vmem:[#allocation10 + $0x1c0] sm:$0xff]
    %v1167 = vld [vmem:[#allocation10 + $0x1c8] sm:$0xff]
    %v1168 = vld [vmem:[#allocation10 + $0x1d0] sm:$0xff]
    %v1169 = vld [vmem:[#allocation10 + $0x1d8] sm:$0xff]
    %v1170 = vld [vmem:[#allocation10 + $0x1e0] sm:$0xff]
    %v1171 = vld [vmem:[#allocation10 + $0x1e8] sm:$0xff]
    %v1172 = vld [vmem:[#allocation10 + $0x1f0] sm:$0xff]
    %v1173 = vld [vmem:[#allocation10 + $0x1f8] sm:$0xff]
    %v1174 = vld [vmem:[#allocation10 + $0x200] sm:$0xff]
    %v1175 = vld [vmem:[#allocation10 + $0x208] sm:$0xff]
    %v1176 = vld [vmem:[#allocation10 + $0x210] sm:$0xff]
    %v1177 = vld [vmem:[#allocation10 + $0x218] sm:$0xff]
    %v1178 = vld [vmem:[#allocation10 + $0x220] sm:$0xff]
    %v1179 = vld [vmem:[#allocation10 + $0x228] sm:$0xff]
    %v1180 = vld [vmem:[#allocation10 + $0x230] sm:$0xff]
    %v1181 = vld [vmem:[#allocation10 + $0x238] sm:$0xff]
    %v1182 = vld [vmem:[#allocation10 + $0x240] sm:$0xff]
    %v1183 = vld [vmem:[#allocation10 + $0x248] sm:$0xff]
    %v1184 = vld [vmem:[#allocation10 + $0x250] sm:$0xff]
    %v1185 = vld [vmem:[#allocation10 + $0x258] sm:$0xff]
    %v1186 = vld [vmem:[#allocation10 + $0x260] sm:$0xff]
    %v1187 = vld [vmem:[#allocation10 + $0x268] sm:$0xff]
    %v1188 = vld [vmem:[#allocation10 + $0x270] sm:$0xff]
    %v1189 = vld [vmem:[#allocation10 + $0x278] sm:$0xff]
    %v1190 = vld [vmem:[#allocation10 + $0x280] sm:$0xff]
    %v1191 = vld [vmem:[#allocation10 + $0x288] sm:$0xff]
    %v1192 = vld [vmem:[#allocation10 + $0x290] sm:$0xff]
    %v1193 = vld [vmem:[#allocation10 + $0x298] sm:$0xff]
    %v1194 = vld [vmem:[#allocation10 + $0x2a0] sm:$0xff]
    %v1195 = vld [vmem:[#allocation10 + $0x2a8] sm:$0xff]
    %v1196 = vld [vmem:[#allocation10 + $0x2b0] sm:$0xff]
    %v1197 = vld [vmem:[#allocation10 + $0x2b8] sm:$0xff]
    %v1198 = vld [vmem:[#allocation10 + $0x2c0] sm:$0xff]
    %v1199 = vld [vmem:[#allocation10 + $0x2c8] sm:$0xff]
    %v1200 = vld [vmem:[#allocation10 + $0x2d0] sm:$0xff]
    %v1201 = vld [vmem:[#allocation10 + $0x2d8] sm:$0xff]
    %v1202 = vld [vmem:[#allocation10 + $0x2e0] sm:$0xff]
    %v1203 = vld [vmem:[#allocation10 + $0x2e8] sm:$0xff]
    %v1204 = vld [vmem:[#allocation10 + $0x2f0] sm:$0xff]
    %v1205 = vld [vmem:[#allocation10 + $0x2f8] sm:$0xff]
    %v1206 = vld [vmem:[#allocation10 + $0x300] sm:$0xff]
    %v1207 = vld [vmem:[#allocation10 + $0x308] sm:$0xff]
    %v1208 = vld [vmem:[#allocation10 + $0x310] sm:$0xff]
    %v1209 = vld [vmem:[#allocation10 + $0x318] sm:$0xff]
    %v1210 = vld [vmem:[#allocation10 + $0x320] sm:$0xff]
    %v1211 = vld [vmem:[#allocation10 + $0x328] sm:$0xff]
    %v1212 = vld [vmem:[#allocation10 + $0x330] sm:$0xff]
    %v1213 = vld [vmem:[#allocation10 + $0x338] sm:$0xff]
    %v1214 = vld [vmem:[#allocation10 + $0x340] sm:$0xff]
    %v1215 = vld [vmem:[#allocation10 + $0x348] sm:$0xff]
    %v1216 = vld [vmem:[#allocation10 + $0x350] sm:$0xff]
    %v1217 = vld [vmem:[#allocation10 + $0x358] sm:$0xff]
    %v1218 = vld [vmem:[#allocation10 + $0x360] sm:$0xff]
    %v1219 = vld [vmem:[#allocation10 + $0x368] sm:$0xff]
    %v1220 = vld [vmem:[#allocation10 + $0x370] sm:$0xff]
    %v1221 = vld [vmem:[#allocation10 + $0x378] sm:$0xff]
    %v1222 = vld [vmem:[#allocation10 + $0x380] sm:$0xff]
    %v1223 = vld [vmem:[#allocation10 + $0x388] sm:$0xff]
    %v1224 = vld [vmem:[#allocation10 + $0x390] sm:$0xff]
    %v1225 = vld [vmem:[#allocation10 + $0x398] sm:$0xff]
    %v1226 = vld [vmem:[#allocation10 + $0x3a0] sm:$0xff]
    %v1227 = vld [vmem:[#allocation10 + $0x3a8] sm:$0xff]
    %v1228 = vld [vmem:[#allocation10 + $0x3b0] sm:$0xff]
    %v1229 = vld [vmem:[#allocation10 + $0x3b8] sm:$0xff]
    %v1230 = vld [vmem:[#allocation10 + $0x3c0] sm:$0xff]
    %v1231 = vld [vmem:[#allocation10 + $0x3c8] sm:$0xff]
    %v1232 = vld [vmem:[#allocation10 + $0x3d0] sm:$0xff]
    %v1233 = vld [vmem:[#allocation10 + $0x3d8] sm:$0xff]
    %v1234 = vld [vmem:[#allocation10 + $0x3e0] sm:$0xff]
    %v1235 = vld [vmem:[#allocation10 + $0x3e8] sm:$0xff]
    %v1236 = vld [vmem:[#allocation10 + $0x3f0] sm:$0xff]
    %v1237 = vld [vmem:[#allocation10 + $0x3f8] sm:$0xff]
    %v1238 = vld [vmem:[#allocation10 + $0x400] sm:$0xff]
    %v1239 = vld [vmem:[#allocation10 + $0x408] sm:$0xff]
    %v1240 = vld [vmem:[#allocation10 + $0x410] sm:$0xff]
    %v1241 = vld [vmem:[#allocation10 + $0x418] sm:$0xff]
    %v1242 = vld [vmem:[#allocation10 + $0x420] sm:$0xff]
    %v1243 = vld [vmem:[#allocation10 + $0x428] sm:$0xff]
    %v1244 = vld [vmem:[#allocation10 + $0x430] sm:$0xff]
    %v1245 = vld [vmem:[#allocation10 + $0x438] sm:$0xff]
    %v1246 = vld [vmem:[#allocation10 + $0x440] sm:$0xff]
    %v1247 = vld [vmem:[#allocation10 + $0x448] sm:$0xff]
    %v1248 = vld [vmem:[#allocation10 + $0x450] sm:$0xff]
    %v1249 = vld [vmem:[#allocation10 + $0x458] sm:$0xff]
    %v1250 = vld [vmem:[#allocation10 + $0x460] sm:$0xff]
    %v1251 = vld [vmem:[#allocation10 + $0x468] sm:$0xff]
    %v1252 = vld [vmem:[#allocation10 + $0x470] sm:$0xff]
    %v1253 = vld [vmem:[#allocation10 + $0x478] sm:$0xff]
    %v1254 = vld [vmem:[#allocation10 + $0x480] sm:$0xff]
    %v1255 = vld [vmem:[#allocation10 + $0x488] sm:$0xff]
    %v1256 = vld [vmem:[#allocation10 + $0x490] sm:$0xff]
    %v1257 = vld [vmem:[#allocation10 + $0x498] sm:$0xff]
    %v1258 = vld [vmem:[#allocation10 + $0x4a0] sm:$0xff]
    %v1259 = vld [vmem:[#allocation10 + $0x4a8] sm:$0xff]
    %v1260 = vld [vmem:[#allocation10 + $0x4b0] sm:$0xff]
    %v1261 = vld [vmem:[#allocation10 + $0x4b8] sm:$0xff]
    %v1262 = vld [vmem:[#allocation10 + $0x4c0] sm:$0xff]
    %v1263 = vld [vmem:[#allocation10 + $0x4c8] sm:$0xff]
    %v1264 = vld [vmem:[#allocation10 + $0x4d0] sm:$0xff]
    %v1265 = vld [vmem:[#allocation10 + $0x4d8] sm:$0xff]
    %v1266 = vld [vmem:[#allocation10 + $0x4e0] sm:$0xff]
    %v1267 = vld [vmem:[#allocation10 + $0x4e8] sm:$0xff]
    %v1268 = vld [vmem:[#allocation10 + $0x4f0] sm:$0xff]
    %v1269 = vld [vmem:[#allocation10 + $0x4f8] sm:$0xff]
    %v1270 = vld [vmem:[#allocation10 + $0x500] sm:$0xff]
    %v1271 = vld [vmem:[#allocation10 + $0x508] sm:$0xff]
    %v1272 = vld [vmem:[#allocation10 + $0x510] sm:$0xff]
    %v1273 = vld [vmem:[#allocation10 + $0x518] sm:$0xff]
    %v1274 = vld [vmem:[#allocation10 + $0x520] sm:$0xff]
    %v1275 = vld [vmem:[#allocation10 + $0x528] sm:$0xff]
    %v1276 = vld [vmem:[#allocation10 + $0x530] sm:$0xff]
    %v1277 = vld [vmem:[#allocation10 + $0x538] sm:$0xff]
    %v1278 = vld [vmem:[#allocation10 + $0x540] sm:$0xff]
    %v1279 = vld [vmem:[#allocation10 + $0x548] sm:$0xff]
    %v1280 = vld [vmem:[#allocation10 + $0x550] sm:$0xff]
    %v1281 = vld [vmem:[#allocation10 + $0x558] sm:$0xff]
    %v1282 = vld [vmem:[#allocation10 + $0x560] sm:$0xff]
    %v1283 = vld [vmem:[#allocation10 + $0x568] sm:$0xff]
    %v1458 = vunpack.c.l.b16 %v1110
    %v1459 = vunpack.c.h.b16 %v1110
    %v1460 = vunpack.c.l.b16 %v1111
    %v1461 = vunpack.c.h.b16 %v1111
    %v1462 = vunpack.c.l.b16 %v1112
    %v1463 = vunpack.c.h.b16 %v1112
    %v1464 = vunpack.c.l.b16 %v1113
    %v1465 = vunpack.c.h.b16 %v1113
    %v1466 = vunpack.c.l.b16 %v1114
    %v1467 = vunpack.c.h.b16 %v1114
    %v1468 = vunpack.c.l.b16 %v1115
    %v1469 = vunpack.c.h.b16 %v1115
    %v1470 = vunpack.c.l.b16 %v1116
    %v1471 = vunpack.c.h.b16 %v1116
    %v1472 = vunpack.c.l.b16 %v1117
    %v1473 = vunpack.c.h.b16 %v1117
    %v1474 = vunpack.c.l.b16 %v1118
    %v1475 = vunpack.c.h.b16 %v1118
    %v1476 = vunpack.c.l.b16 %v1119
    %v1477 = vunpack.c.h.b16 %v1119
    %v1478 = vunpack.c.l.b16 %v1120
    %v1479 = vunpack.c.h.b16 %v1120
    %v1480 = vunpack.c.l.b16 %v1121
    %v1481 = vunpack.c.h.b16 %v1121
    %v1482 = vunpack.c.l.b16 %v1122
    %v1483 = vunpack.c.h.b16 %v1122
    %v1484 = vunpack.c.l.b16 %v1123
    %v1485 = vunpack.c.h.b16 %v1123
    %v1486 = vunpack.c.l.b16 %v1124
    %v1487 = vunpack.c.h.b16 %v1124
    %v1488 = vunpack.c.l.b16 %v1125
    %v1489 = vunpack.c.h.b16 %v1125
    %v1490 = vunpack.c.l.b16 %v1126
    %v1491 = vunpack.c.h.b16 %v1126
    %v1492 = vunpack.c.l.b16 %v1127
    %v1493 = vunpack.c.h.b16 %v1127
    %v1494 = vunpack.c.l.b16 %v1128
    %v1495 = vunpack.c.h.b16 %v1128
    %v1496 = vunpack.c.l.b16 %v1129
    %v1497 = vunpack.c.h.b16 %v1129
    %v1498 = vunpack.c.l.b16 %v1130
    %v1499 = vunpack.c.h.b16 %v1130
    %v1500 = vunpack.c.l.b16 %v1131
    %v1501 = vunpack.c.h.b16 %v1131
    %v1502 = vunpack.c.l.b16 %v1132
    %v1503 = vunpack.c.h.b16 %v1132
    %v1504 = vunpack.c.l.b16 %v1133
    %v1505 = vunpack.c.h.b16 %v1133
    %v1506 = vunpack.c.l.b16 %v1134
    %v1507 = vunpack.c.h.b16 %v1134
    %v1508 = vunpack.c.l.b16 %v1135
    %v1509 = vunpack.c.h.b16 %v1135
    %v1510 = vunpack.c.l.b16 %v1136
    %v1511 = vunpack.c.h.b16 %v1136
    %v1512 = vunpack.c.l.b16 %v1137
    %v1513 = vunpack.c.h.b16 %v1137
    %v1514 = vunpack.c.l.b16 %v1138
    %v1515 = vunpack.c.h.b16 %v1138
    %v1516 = vunpack.c.l.b16 %v1139
    %v1517 = vunpack.c.h.b16 %v1139
    %v1518 = vunpack.c.l.b16 %v1140
    %v1519 = vunpack.c.h.b16 %v1140
    %v1520 = vunpack.c.l.b16 %v1141
    %v1521 = vunpack.c.h.b16 %v1141
    %v1522 = vunpack.c.l.b16 %v1142
    %v1523 = vunpack.c.h.b16 %v1142
    %v1524 = vunpack.c.l.b16 %v1143
    %v1525 = vunpack.c.h.b16 %v1143
    %v1526 = vunpack.c.l.b16 %v1144
    %v1527 = vunpack.c.h.b16 %v1144
    %v1528 = vunpack.c.l.b16 %v1145
    %v1529 = vunpack.c.h.b16 %v1145
    %v1530 = vunpack.c.l.b16 %v1146
    %v1531 = vunpack.c.h.b16 %v1146
    %v1532 = vunpack.c.l.b16 %v1147
    %v1533 = vunpack.c.h.b16 %v1147
    %v1534 = vunpack.c.l.b16 %v1148
    %v1535 = vunpack.c.h.b16 %v1148
    %v1536 = vunpack.c.l.b16 %v1149
    %v1537 = vunpack.c.h.b16 %v1149
    %v1538 = vunpack.c.l.b16 %v1150
    %v1539 = vunpack.c.h.b16 %v1150
    %v1540 = vunpack.c.l.b16 %v1151
    %v1541 = vunpack.c.h.b16 %v1151
    %v1542 = vunpack.c.l.b16 %v1152
    %v1543 = vunpack.c.h.b16 %v1152
    %v1544 = vunpack.c.l.b16 %v1153
    %v1545 = vunpack.c.h.b16 %v1153
    %v1546 = vunpack.c.l.b16 %v1154
    %v1547 = vunpack.c.h.b16 %v1154
    %v1548 = vunpack.c.l.b16 %v1155
    %v1549 = vunpack.c.h.b16 %v1155
    %v1550 = vunpack.c.l.b16 %v1156
    %v1551 = vunpack.c.h.b16 %v1156
    %v1552 = vunpack.c.l.b16 %v1157
    %v1553 = vunpack.c.h.b16 %v1157
    %v1554 = vunpack.c.l.b16 %v1158
    %v1555 = vunpack.c.h.b16 %v1158
    %v1556 = vunpack.c.l.b16 %v1159
    %v1557 = vunpack.c.h.b16 %v1159
    %v1558 = vunpack.c.l.b16 %v1160
    %v1559 = vunpack.c.h.b16 %v1160
    %v1560 = vunpack.c.l.b16 %v1161
    %v1561 = vunpack.c.h.b16 %v1161
    %v1562 = vunpack.c.l.b16 %v1162
    %v1563 = vunpack.c.h.b16 %v1162
    %v1564 = vunpack.c.l.b16 %v1163
    %v1565 = vunpack.c.h.b16 %v1163
    %v1566 = vunpack.c.l.b16 %v1164
    %v1567 = vunpack.c.h.b16 %v1164
    %v1568 = vunpack.c.l.b16 %v1165
    %v1569 = vunpack.c.h.b16 %v1165
    %v1570 = vunpack.c.l.b16 %v1166
    %v1571 = vunpack.c.h.b16 %v1166
    %v1572 = vunpack.c.l.b16 %v1167
    %v1573 = vunpack.c.h.b16 %v1167
    %v1574 = vunpack.c.l.b16 %v1168
    %v1575 = vunpack.c.h.b16 %v1168
    %v1576 = vunpack.c.l.b16 %v1169
    %v1577 = vunpack.c.h.b16 %v1169
    %v1578 = vunpack.c.l.b16 %v1170
    %v1579 = vunpack.c.h.b16 %v1170
    %v1580 = vunpack.c.l.b16 %v1171
    %v1581 = vunpack.c.h.b16 %v1171
    %v1582 = vunpack.c.l.b16 %v1172
    %v1583 = vunpack.c.h.b16 %v1172
    %v1584 = vunpack.c.l.b16 %v1173
    %v1585 = vunpack.c.h.b16 %v1173
    %v1586 = vunpack.c.l.b16 %v1174
    %v1587 = vunpack.c.h.b16 %v1174
    %v1588 = vunpack.c.l.b16 %v1175
    %v1589 = vunpack.c.h.b16 %v1175
    %v1590 = vunpack.c.l.b16 %v1176
    %v1591 = vunpack.c.h.b16 %v1176
    %v1592 = vunpack.c.l.b16 %v1177
    %v1593 = vunpack.c.h.b16 %v1177
    %v1594 = vunpack.c.l.b16 %v1178
    %v1595 = vunpack.c.h.b16 %v1178
    %v1596 = vunpack.c.l.b16 %v1179
    %v1597 = vunpack.c.h.b16 %v1179
    %v1598 = vunpack.c.l.b16 %v1180
    %v1599 = vunpack.c.h.b16 %v1180
    %v1600 = vunpack.c.l.b16 %v1181
    %v1601 = vunpack.c.h.b16 %v1181
    %v1602 = vunpack.c.l.b16 %v1182
    %v1603 = vunpack.c.h.b16 %v1182
    %v1604 = vunpack.c.l.b16 %v1183
    %v1605 = vunpack.c.h.b16 %v1183
    %v1606 = vunpack.c.l.b16 %v1184
    %v1607 = vunpack.c.h.b16 %v1184
    %v1608 = vunpack.c.l.b16 %v1185
    %v1609 = vunpack.c.h.b16 %v1185
    %v1610 = vunpack.c.l.b16 %v1186
    %v1611 = vunpack.c.h.b16 %v1186
    %v1612 = vunpack.c.l.b16 %v1187
    %v1613 = vunpack.c.h.b16 %v1187
    %v1614 = vunpack.c.l.b16 %v1188
    %v1615 = vunpack.c.h.b16 %v1188
    %v1616 = vunpack.c.l.b16 %v1189
    %v1617 = vunpack.c.h.b16 %v1189
    %v1618 = vunpack.c.l.b16 %v1190
    %v1619 = vunpack.c.h.b16 %v1190
    %v1620 = vunpack.c.l.b16 %v1191
    %v1621 = vunpack.c.h.b16 %v1191
    %v1622 = vunpack.c.l.b16 %v1192
    %v1623 = vunpack.c.h.b16 %v1192
    %v1624 = vunpack.c.l.b16 %v1193
    %v1625 = vunpack.c.h.b16 %v1193
    %v1626 = vunpack.c.l.b16 %v1194
    %v1627 = vunpack.c.h.b16 %v1194
    %v1628 = vunpack.c.l.b16 %v1195
    %v1629 = vunpack.c.h.b16 %v1195
    %v1630 = vunpack.c.l.b16 %v1196
    %v1631 = vunpack.c.h.b16 %v1196
    %v1632 = vunpack.c.l.b16 %v1197
    %v1633 = vunpack.c.h.b16 %v1197
    %v1634 = vunpack.c.l.b16 %v1198
    %v1635 = vunpack.c.h.b16 %v1198
    %v1636 = vunpack.c.l.b16 %v1199
    %v1637 = vunpack.c.h.b16 %v1199
    %v1638 = vunpack.c.l.b16 %v1200
    %v1639 = vunpack.c.h.b16 %v1200
    %v1640 = vunpack.c.l.b16 %v1201
    %v1641 = vunpack.c.h.b16 %v1201
    %v1642 = vunpack.c.l.b16 %v1202
    %v1643 = vunpack.c.h.b16 %v1202
    %v1644 = vunpack.c.l.b16 %v1203
    %v1645 = vunpack.c.h.b16 %v1203
    %v1646 = vunpack.c.l.b16 %v1204
    %v1647 = vunpack.c.h.b16 %v1204
    %v1648 = vunpack.c.l.b16 %v1205
    %v1649 = vunpack.c.h.b16 %v1205
    %v1650 = vunpack.c.l.b16 %v1206
    %v1651 = vunpack.c.h.b16 %v1206
    %v1652 = vunpack.c.l.b16 %v1207
    %v1653 = vunpack.c.h.b16 %v1207
    %v1654 = vunpack.c.l.b16 %v1208
    %v1655 = vunpack.c.h.b16 %v1208
    %v1656 = vunpack.c.l.b16 %v1209
    %v1657 = vunpack.c.h.b16 %v1209
    %v1658 = vunpack.c.l.b16 %v1210
    %v1659 = vunpack.c.h.b16 %v1210
    %v1660 = vunpack.c.l.b16 %v1211
    %v1661 = vunpack.c.h.b16 %v1211
    %v1662 = vunpack.c.l.b16 %v1212
    %v1663 = vunpack.c.h.b16 %v1212
    %v1664 = vunpack.c.l.b16 %v1213
    %v1665 = vunpack.c.h.b16 %v1213
    %v1666 = vunpack.c.l.b16 %v1214
    %v1667 = vunpack.c.h.b16 %v1214
    %v1668 = vunpack.c.l.b16 %v1215
    %v1669 = vunpack.c.h.b16 %v1215
    %v1670 = vunpack.c.l.b16 %v1216
    %v1671 = vunpack.c.h.b16 %v1216
    %v1672 = vunpack.c.l.b16 %v1217
    %v1673 = vunpack.c.h.b16 %v1217
    %v1674 = vunpack.c.l.b16 %v1218
    %v1675 = vunpack.c.h.b16 %v1218
    %v1676 = vunpack.c.l.b16 %v1219
    %v1677 = vunpack.c.h.b16 %v1219
    %v1678 = vunpack.c.l.b16 %v1220
    %v1679 = vunpack.c.h.b16 %v1220
    %v1680 = vunpack.c.l.b16 %v1221
    %v1681 = vunpack.c.h.b16 %v1221
    %v1682 = vunpack.c.l.b16 %v1222
    %v1683 = vunpack.c.h.b16 %v1222
    %v1684 = vunpack.c.l.b16 %v1223
    %v1685 = vunpack.c.h.b16 %v1223
    %v1686 = vunpack.c.l.b16 %v1224
    %v1687 = vunpack.c.h.b16 %v1224
    %v1688 = vunpack.c.l.b16 %v1225
    %v1689 = vunpack.c.h.b16 %v1225
    %v1690 = vunpack.c.l.b16 %v1226
    %v1691 = vunpack.c.h.b16 %v1226
    %v1692 = vunpack.c.l.b16 %v1227
    %v1693 = vunpack.c.h.b16 %v1227
    %v1694 = vunpack.c.l.b16 %v1228
    %v1695 = vunpack.c.h.b16 %v1228
    %v1696 = vunpack.c.l.b16 %v1229
    %v1697 = vunpack.c.h.b16 %v1229
    %v1698 = vunpack.c.l.b16 %v1230
    %v1699 = vunpack.c.h.b16 %v1230
    %v1700 = vunpack.c.l.b16 %v1231
    %v1701 = vunpack.c.h.b16 %v1231
    %v1702 = vunpack.c.l.b16 %v1232
    %v1703 = vunpack.c.h.b16 %v1232
    %v1704 = vunpack.c.l.b16 %v1233
    %v1705 = vunpack.c.h.b16 %v1233
    %v1706 = vunpack.c.l.b16 %v1234
    %v1707 = vunpack.c.h.b16 %v1234
    %v1708 = vunpack.c.l.b16 %v1235
    %v1709 = vunpack.c.h.b16 %v1235
    %v1710 = vunpack.c.l.b16 %v1236
    %v1711 = vunpack.c.h.b16 %v1236
    %v1712 = vunpack.c.l.b16 %v1237
    %v1713 = vunpack.c.h.b16 %v1237
    %v1714 = vunpack.c.l.b16 %v1238
    %v1715 = vunpack.c.h.b16 %v1238
    %v1716 = vunpack.c.l.b16 %v1239
    %v1717 = vunpack.c.h.b16 %v1239
    %v1718 = vunpack.c.l.b16 %v1240
    %v1719 = vunpack.c.h.b16 %v1240
    %v1720 = vunpack.c.l.b16 %v1241
    %v1721 = vunpack.c.h.b16 %v1241
    %v1722 = vunpack.c.l.b16 %v1242
    %v1723 = vunpack.c.h.b16 %v1242
    %v1724 = vunpack.c.l.b16 %v1243
    %v1725 = vunpack.c.h.b16 %v1243
    %v1726 = vunpack.c.l.b16 %v1244
    %v1727 = vunpack.c.h.b16 %v1244
    %v1728 = vunpack.c.l.b16 %v1245
    %v1729 = vunpack.c.h.b16 %v1245
    %v1730 = vunpack.c.l.b16 %v1246
    %v1731 = vunpack.c.h.b16 %v1246
    %v1732 = vunpack.c.l.b16 %v1247
    %v1733 = vunpack.c.h.b16 %v1247
    %v1734 = vunpack.c.l.b16 %v1248
    %v1735 = vunpack.c.h.b16 %v1248
    %v1736 = vunpack.c.l.b16 %v1249
    %v1737 = vunpack.c.h.b16 %v1249
    %v1738 = vunpack.c.l.b16 %v1250
    %v1739 = vunpack.c.h.b16 %v1250
    %v1740 = vunpack.c.l.b16 %v1251
    %v1741 = vunpack.c.h.b16 %v1251
    %v1742 = vunpack.c.l.b16 %v1252
    %v1743 = vunpack.c.h.b16 %v1252
    %v1744 = vunpack.c.l.b16 %v1253
    %v1745 = vunpack.c.h.b16 %v1253
    %v1746 = vunpack.c.l.b16 %v1254
    %v1747 = vunpack.c.h.b16 %v1254
    %v1748 = vunpack.c.l.b16 %v1255
    %v1749 = vunpack.c.h.b16 %v1255
    %v1750 = vunpack.c.l.b16 %v1256
    %v1751 = vunpack.c.h.b16 %v1256
    %v1752 = vunpack.c.l.b16 %v1257
    %v1753 = vunpack.c.h.b16 %v1257
    %v1754 = vunpack.c.l.b16 %v1258
    %v1755 = vunpack.c.h.b16 %v1258
    %v1756 = vunpack.c.l.b16 %v1259
    %v1757 = vunpack.c.h.b16 %v1259
    %v1758 = vunpack.c.l.b16 %v1260
    %v1759 = vunpack.c.h.b16 %v1260
    %v1760 = vunpack.c.l.b16 %v1261
    %v1761 = vunpack.c.h.b16 %v1261
    %v1762 = vunpack.c.l.b16 %v1262
    %v1763 = vunpack.c.h.b16 %v1262
    %v1764 = vunpack.c.l.b16 %v1263
    %v1765 = vunpack.c.h.b16 %v1263
    %v1766 = vunpack.c.l.b16 %v1264
    %v1767 = vunpack.c.h.b16 %v1264
    %v1768 = vunpack.c.l.b16 %v1265
    %v1769 = vunpack.c.h.b16 %v1265
    %v1770 = vunpack.c.l.b16 %v1266
    %v1771 = vunpack.c.h.b16 %v1266
    %v1772 = vunpack.c.l.b16 %v1267
    %v1773 = vunpack.c.h.b16 %v1267
    %v1774 = vunpack.c.l.b16 %v1268
    %v1775 = vunpack.c.h.b16 %v1268
    %v1776 = vunpack.c.l.b16 %v1269
    %v1777 = vunpack.c.h.b16 %v1269
    %v1778 = vunpack.c.l.b16 %v1270
    %v1779 = vunpack.c.h.b16 %v1270
    %v1780 = vunpack.c.l.b16 %v1271
    %v1781 = vunpack.c.h.b16 %v1271
    %v1782 = vunpack.c.l.b16 %v1272
    %v1783 = vunpack.c.h.b16 %v1272
    %v1784 = vunpack.c.l.b16 %v1273
    %v1785 = vunpack.c.h.b16 %v1273
    %v1786 = vunpack.c.l.b16 %v1274
    %v1787 = vunpack.c.h.b16 %v1274
    %v1788 = vunpack.c.l.b16 %v1275
    %v1789 = vunpack.c.h.b16 %v1275
    %v1790 = vunpack.c.l.b16 %v1276
    %v1791 = vunpack.c.h.b16 %v1276
    %v1792 = vunpack.c.l.b16 %v1277
    %v1793 = vunpack.c.h.b16 %v1277
    %v1794 = vunpack.c.l.b16 %v1278
    %v1795 = vunpack.c.h.b16 %v1278
    %v1796 = vunpack.c.l.b16 %v1279
    %v1797 = vunpack.c.h.b16 %v1279
    %v1798 = vunpack.c.l.b16 %v1280
    %v1799 = vunpack.c.h.b16 %v1280
    %v1800 = vunpack.c.l.b16 %v1281
    %v1801 = vunpack.c.h.b16 %v1281
    %v1802 = vunpack.c.l.b16 %v1282
    %v1803 = vunpack.c.h.b16 %v1282
    %v1804 = vunpack.c.l.b16 %v1283
    %v1805 = vunpack.c.h.b16 %v1283
    %v1806 = vpack.c.b16 %v1460, %v1458
    %v1807 = vpack.c.b16 %v1461, %v1459
    %v1808 = vpack.c.b16 %v1464, %v1462
    %v1809 = vpack.c.b16 %v1465, %v1463
    %v1810 = vpack.c.b16 %v1468, %v1466
    %v1811 = vpack.c.b16 %v1469, %v1467
    %v1812 = vpack.c.b16 %v1472, %v1470
    %v1813 = vpack.c.b16 %v1473, %v1471
    %v1814 = vpack.c.b16 %v1476, %v1474
    %v1815 = vpack.c.b16 %v1477, %v1475
    %v1816 = vpack.c.b16 %v1480, %v1478
    %v1817 = vpack.c.b16 %v1481, %v1479
    %v1818 = vpack.c.b16 %v1484, %v1482
    %v1819 = vpack.c.b16 %v1485, %v1483
    %v1820 = vpack.c.b16 %v1488, %v1486
    %v1821 = vpack.c.b16 %v1489, %v1487
    %v1822 = vpack.c.b16 %v1492, %v1490
    %v1823 = vpack.c.b16 %v1493, %v1491
    %v1824 = vpack.c.b16 %v1496, %v1494
    %v1825 = vpack.c.b16 %v1497, %v1495
    %v1826 = vpack.c.b16 %v1500, %v1498
    %v1827 = vpack.c.b16 %v1501, %v1499
    %v1828 = vpack.c.b16 %v1504, %v1502
    %v1829 = vpack.c.b16 %v1505, %v1503
    %v1830 = vpack.c.b16 %v1508, %v1506
    %v1831 = vpack.c.b16 %v1509, %v1507
    %v1832 = vpack.c.b16 %v1512, %v1510
    %v1833 = vpack.c.b16 %v1513, %v1511
    %v1834 = vpack.c.b16 %v1516, %v1514
    %v1835 = vpack.c.b16 %v1517, %v1515
    %v1836 = vpack.c.b16 %v1520, %v1518
    %v1837 = vpack.c.b16 %v1521, %v1519
    %v1838 = vpack.c.b16 %v1524, %v1522
    %v1839 = vpack.c.b16 %v1525, %v1523
    %v1840 = vpack.c.b16 %v1528, %v1526
    %v1841 = vpack.c.b16 %v1529, %v1527
    %v1842 = vpack.c.b16 %v1532, %v1530
    %v1843 = vpack.c.b16 %v1533, %v1531
    %v1844 = vpack.c.b16 %v1536, %v1534
    %v1845 = vpack.c.b16 %v1537, %v1535
    %v1846 = vpack.c.b16 %v1540, %v1538
    %v1847 = vpack.c.b16 %v1541, %v1539
    %v1848 = vpack.c.b16 %v1544, %v1542
    %v1849 = vpack.c.b16 %v1545, %v1543
    %v1850 = vpack.c.b16 %v1548, %v1546
    %v1851 = vpack.c.b16 %v1549, %v1547
    %v1852 = vpack.c.b16 %v1552, %v1550
    %v1853 = vpack.c.b16 %v1553, %v1551
    %v1854 = vpack.c.b16 %v1556, %v1554
    %v1855 = vpack.c.b16 %v1557, %v1555
    %v1856 = vpack.c.b16 %v1560, %v1558
    %v1857 = vpack.c.b16 %v1561, %v1559
    %v1858 = vpack.c.b16 %v1564, %v1562
    %v1859 = vpack.c.b16 %v1565, %v1563
    %v1860 = vpack.c.b16 %v1568, %v1566
    %v1861 = vpack.c.b16 %v1569, %v1567
    %v1862 = vpack.c.b16 %v1572, %v1570
    %v1863 = vpack.c.b16 %v1573, %v1571
    %v1864 = vpack.c.b16 %v1576, %v1574
    %v1865 = vpack.c.b16 %v1577, %v1575
    %v1866 = vpack.c.b16 %v1580, %v1578
    %v1867 = vpack.c.b16 %v1581, %v1579
    %v1868 = vpack.c.b16 %v1584, %v1582
    %v1869 = vpack.c.b16 %v1585, %v1583
    %v1870 = vpack.c.b16 %v1588, %v1586
    %v1871 = vpack.c.b16 %v1589, %v1587
    %v1872 = vpack.c.b16 %v1592, %v1590
    %v1873 = vpack.c.b16 %v1593, %v1591
    %v1874 = vpack.c.b16 %v1596, %v1594
    %v1875 = vpack.c.b16 %v1597, %v1595
    %v1876 = vpack.c.b16 %v1600, %v1598
    %v1877 = vpack.c.b16 %v1601, %v1599
    %v1878 = vpack.c.b16 %v1604, %v1602
    %v1879 = vpack.c.b16 %v1605, %v1603
    %v1880 = vpack.c.b16 %v1608, %v1606
    %v1881 = vpack.c.b16 %v1609, %v1607
    %v1882 = vpack.c.b16 %v1612, %v1610
    %v1883 = vpack.c.b16 %v1613, %v1611
    %v1884 = vpack.c.b16 %v1616, %v1614
    %v1885 = vpack.c.b16 %v1617, %v1615
    %v1886 = vpack.c.b16 %v1620, %v1618
    %v1887 = vpack.c.b16 %v1621, %v1619
    %v1888 = vpack.c.b16 %v1624, %v1622
    %v1889 = vpack.c.b16 %v1625, %v1623
    %v1890 = vpack.c.b16 %v1628, %v1626
    %v1891 = vpack.c.b16 %v1629, %v1627
    %v1892 = vpack.c.b16 %v1632, %v1630
    %v1893 = vpack.c.b16 %v1633, %v1631
    %v1894 = vpack.c.b16 %v1636, %v1634
    %v1895 = vpack.c.b16 %v1637, %v1635
    %v1896 = vpack.c.b16 %v1640, %v1638
    %v1897 = vpack.c.b16 %v1641, %v1639
    %v1898 = vpack.c.b16 %v1644, %v1642
    %v1899 = vpack.c.b16 %v1645, %v1643
    %v1900 = vpack.c.b16 %v1648, %v1646
    %v1901 = vpack.c.b16 %v1649, %v1647
    %v1902 = vpack.c.b16 %v1652, %v1650
    %v1903 = vpack.c.b16 %v1653, %v1651
    %v1904 = vpack.c.b16 %v1656, %v1654
    %v1905 = vpack.c.b16 %v1657, %v1655
    %v1906 = vpack.c.b16 %v1660, %v1658
    %v1907 = vpack.c.b16 %v1661, %v1659
    %v1908 = vpack.c.b16 %v1664, %v1662
    %v1909 = vpack.c.b16 %v1665, %v1663
    %v1910 = vpack.c.b16 %v1668, %v1666
    %v1911 = vpack.c.b16 %v1669, %v1667
    %v1912 = vpack.c.b16 %v1672, %v1670
    %v1913 = vpack.c.b16 %v1673, %v1671
    %v1914 = vpack.c.b16 %v1676, %v1674
    %v1915 = vpack.c.b16 %v1677, %v1675
    %v1916 = vpack.c.b16 %v1680, %v1678
    %v1917 = vpack.c.b16 %v1681, %v1679
    %v1918 = vpack.c.b16 %v1684, %v1682
    %v1919 = vpack.c.b16 %v1685, %v1683
    %v1920 = vpack.c.b16 %v1688, %v1686
    %v1921 = vpack.c.b16 %v1689, %v1687
    %v1922 = vpack.c.b16 %v1692, %v1690
    %v1923 = vpack.c.b16 %v1693, %v1691
    %v1924 = vpack.c.b16 %v1696, %v1694
    %v1925 = vpack.c.b16 %v1697, %v1695
    %v1926 = vpack.c.b16 %v1700, %v1698
    %v1927 = vpack.c.b16 %v1701, %v1699
    %v1928 = vpack.c.b16 %v1704, %v1702
    %v1929 = vpack.c.b16 %v1705, %v1703
    %v1930 = vpack.c.b16 %v1708, %v1706
    %v1931 = vpack.c.b16 %v1709, %v1707
    %v1932 = vpack.c.b16 %v1712, %v1710
    %v1933 = vpack.c.b16 %v1713, %v1711
    %v1934 = vpack.c.b16 %v1716, %v1714
    %v1935 = vpack.c.b16 %v1717, %v1715
    %v1936 = vpack.c.b16 %v1720, %v1718
    %v1937 = vpack.c.b16 %v1721, %v1719
    %v1938 = vpack.c.b16 %v1724, %v1722
    %v1939 = vpack.c.b16 %v1725, %v1723
    %v1940 = vpack.c.b16 %v1728, %v1726
    %v1941 = vpack.c.b16 %v1729, %v1727
    %v1942 = vpack.c.b16 %v1732, %v1730
    %v1943 = vpack.c.b16 %v1733, %v1731
    %v1944 = vpack.c.b16 %v1736, %v1734
    %v1945 = vpack.c.b16 %v1737, %v1735
    %v1946 = vpack.c.b16 %v1740, %v1738
    %v1947 = vpack.c.b16 %v1741, %v1739
    %v1948 = vpack.c.b16 %v1744, %v1742
    %v1949 = vpack.c.b16 %v1745, %v1743
    %v1950 = vpack.c.b16 %v1748, %v1746
    %v1951 = vpack.c.b16 %v1749, %v1747
    %v1952 = vpack.c.b16 %v1752, %v1750
    %v1953 = vpack.c.b16 %v1753, %v1751
    %v1954 = vpack.c.b16 %v1756, %v1754
    %v1955 = vpack.c.b16 %v1757, %v1755
    %v1956 = vpack.c.b16 %v1760, %v1758
    %v1957 = vpack.c.b16 %v1761, %v1759
    %v1958 = vpack.c.b16 %v1764, %v1762
    %v1959 = vpack.c.b16 %v1765, %v1763
    %v1960 = vpack.c.b16 %v1768, %v1766
    %v1961 = vpack.c.b16 %v1769, %v1767
    %v1962 = vpack.c.b16 %v1772, %v1770
    %v1963 = vpack.c.b16 %v1773, %v1771
    %v1964 = vpack.c.b16 %v1776, %v1774
    %v1965 = vpack.c.b16 %v1777, %v1775
    %v1966 = vpack.c.b16 %v1780, %v1778
    %v1967 = vpack.c.b16 %v1781, %v1779
    %v1968 = vpack.c.b16 %v1784, %v1782
    %v1969 = vpack.c.b16 %v1785, %v1783
    %v1970 = vpack.c.b16 %v1788, %v1786
    %v1971 = vpack.c.b16 %v1789, %v1787
    %v1972 = vpack.c.b16 %v1792, %v1790
    %v1973 = vpack.c.b16 %v1793, %v1791
    %v1974 = vpack.c.b16 %v1796, %v1794
    %v1975 = vpack.c.b16 %v1797, %v1795
    %v1976 = vpack.c.b16 %v1800, %v1798
    %v1977 = vpack.c.b16 %v1801, %v1799
    %v1978 = vpack.c.b16 %v1804, %v1802
    %v1979 = vpack.c.b16 %v1805, %v1803
    %vm2154 = vcmask 916480
    %v2156 = vsel %vm2154, %v1076, 0
    %v2159 = vsel %vm2154, %v1087, 0
    %v2162 = vsel %vm2154, %v1098, 0
    %v2165 = vsel %vm2154, %v1109, 0
    %2167 = vmatpush.bf16.msra.mxu0 %v1820
    %2168 = vmatpush.bf16.msra.mxu0 %v1818
    %2169 = vmatpush.bf16.msra.mxu0 %v1816
    %2170 = vmatpush.bf16.msra.mxu0 %v1814
    %2171 = vmatpush.bf16.msra.mxu0 %v1812
    %2172 = vmatpush.bf16.msra.mxu0 %v1810
    %2173 = vmatpush.bf16.msra.mxu0 %v1808
    %2174 = vmatpush.bf16.msra.mxu0 %v1806
    %2175 = vmatmul.bf16.gmra.mxu0 %v1066
    %v2176 = vpop.f32.mrf.mxu0
    %v2177 = vadd.f32 0.0, %v2176
    %v2178 = vpop.f32.mrf.mxu0
    %v2179 = vadd.f32 0.0, %v2178
    %2180 = vmatmul.bf16.gmra.mxu0 %v1077
    %v2181 = vpop.f32.mrf.mxu0
    %v2182 = vadd.f32 0.0, %v2181
    %v2183 = vpop.f32.mrf.mxu0
    %v2184 = vadd.f32 0.0, %v2183
    %2185 = vmatmul.bf16.gmra.mxu0 %v1088
    %v2186 = vpop.f32.mrf.mxu0
    %v2187 = vadd.f32 0.0, %v2186
    %v2188 = vpop.f32.mrf.mxu0
    %v2189 = vadd.f32 0.0, %v2188
    %2190 = vmatmul.bf16.gmra.mxu0 %v1099
    %v2191 = vpop.f32.mrf.mxu0
    %v2192 = vadd.f32 0.0, %v2191
    %v2193 = vpop.f32.mrf.mxu0
    %2194 = vdwg.mxu0
    %2195 = vmatpush.bf16.msra.mxu0 %v1836
    %2196 = vmatpush.bf16.msra.mxu0 %v1834
    %2197 = vmatpush.bf16.msra.mxu0 %v1832
    %2198 = vmatpush.bf16.msra.mxu0 %v1830
    %2199 = vmatpush.bf16.msra.mxu0 %v1828
    %2200 = vmatpush.bf16.msra.mxu0 %v1826
    %2201 = vmatpush.bf16.msra.mxu0 %v1824
    %2202 = vmatpush.bf16.msra.mxu0 %v1822
    %2203 = vmatmul.bf16.gmra.mxu0 %v1067
    %v2204 = vpop.f32.mrf.mxu0
    %v2205 = vadd.f32 %v2177, %v2204
    %v2206 = vpop.f32.mrf.mxu0
    %v2207 = vadd.f32 %v2179, %v2206
    %2208 = vmatmul.bf16.gmra.mxu0 %v1078
    %v2209 = vpop.f32.mrf.mxu0
    %v2210 = vadd.f32 %v2182, %v2209
    %v2211 = vpop.f32.mrf.mxu0
    %v2212 = vadd.f32 %v2184, %v2211
    %2213 = vmatmul.bf16.gmra.mxu0 %v1089
    %v2214 = vpop.f32.mrf.mxu0
    %v2215 = vadd.f32 %v2187, %v2214
    %v2216 = vpop.f32.mrf.mxu0
    %v2217 = vadd.f32 %v2189, %v2216
    %2218 = vmatmul.bf16.gmra.mxu0 %v1100
    %v2219 = vpop.f32.mrf.mxu0
    %v2220 = vadd.f32 %v2192, %v2219
    %v2221 = vpop.f32.mrf.mxu0
    %2222 = vdwg.mxu0
    %2223 = vmatpush.bf16.msra.mxu0 %v1852
    %2224 = vmatpush.bf16.msra.mxu0 %v1850
    %2225 = vmatpush.bf16.msra.mxu0 %v1848
    %2226 = vmatpush.bf16.msra.mxu0 %v1846
    %2227 = vmatpush.bf16.msra.mxu0 %v1844
    %2228 = vmatpush.bf16.msra.mxu0 %v1842
    %2229 = vmatpush.bf16.msra.mxu0 %v1840
    %2230 = vmatpush.bf16.msra.mxu0 %v1838
    %2231 = vmatmul.bf16.gmra.mxu0 %v1068
    %v2232 = vpop.f32.mrf.mxu0
    %v2233 = vadd.f32 %v2205, %v2232
    %v2234 = vpop.f32.mrf.mxu0
    %v2235 = vadd.f32 %v2207, %v2234
    %2236 = vmatmul.bf16.gmra.mxu0 %v1079
    %v2237 = vpop.f32.mrf.mxu0
    %v2238 = vadd.f32 %v2210, %v2237
    %v2239 = vpop.f32.mrf.mxu0
    %v2240 = vadd.f32 %v2212, %v2239
    %2241 = vmatmul.bf16.gmra.mxu0 %v1090
    %v2242 = vpop.f32.mrf.mxu0
    %v2243 = vadd.f32 %v2215, %v2242
    %v2244 = vpop.f32.mrf.mxu0
    %v2245 = vadd.f32 %v2217, %v2244
    %2246 = vmatmul.bf16.gmra.mxu0 %v1101
    %v2247 = vpop.f32.mrf.mxu0
    %v2248 = vadd.f32 %v2220, %v2247
    %v2249 = vpop.f32.mrf.mxu0
    %2250 = vdwg.mxu0
    %2251 = vmatpush.bf16.msra.mxu0 %v1868
    %2252 = vmatpush.bf16.msra.mxu0 %v1866
    %2253 = vmatpush.bf16.msra.mxu0 %v1864
    %2254 = vmatpush.bf16.msra.mxu0 %v1862
    %2255 = vmatpush.bf16.msra.mxu0 %v1860
    %2256 = vmatpush.bf16.msra.mxu0 %v1858
    %2257 = vmatpush.bf16.msra.mxu0 %v1856
    %2258 = vmatpush.bf16.msra.mxu0 %v1854
    %2259 = vmatmul.bf16.gmra.mxu0 %v1069
    %v2260 = vpop.f32.mrf.mxu0
    %v2261 = vadd.f32 %v2233, %v2260
    %v2262 = vpop.f32.mrf.mxu0
    %v2263 = vadd.f32 %v2235, %v2262
    %2264 = vmatmul.bf16.gmra.mxu0 %v1080
    %v2265 = vpop.f32.mrf.mxu0
    %v2266 = vadd.f32 %v2238, %v2265
    %v2267 = vpop.f32.mrf.mxu0
    %v2268 = vadd.f32 %v2240, %v2267
    %2269 = vmatmul.bf16.gmra.mxu0 %v1091
    %v2270 = vpop.f32.mrf.mxu0
    %v2271 = vadd.f32 %v2243, %v2270
    %v2272 = vpop.f32.mrf.mxu0
    %v2273 = vadd.f32 %v2245, %v2272
    %2274 = vmatmul.bf16.gmra.mxu0 %v1102
    %v2275 = vpop.f32.mrf.mxu0
    %v2276 = vadd.f32 %v2248, %v2275
    %v2277 = vpop.f32.mrf.mxu0
    %2278 = vdwg.mxu0
    %2279 = vmatpush.bf16.msra.mxu0 %v1884
    %2280 = vmatpush.bf16.msra.mxu0 %v1882
    %2281 = vmatpush.bf16.msra.mxu0 %v1880
    %2282 = vmatpush.bf16.msra.mxu0 %v1878
    %2283 = vmatpush.bf16.msra.mxu0 %v1876
    %2284 = vmatpush.bf16.msra.mxu0 %v1874
    %2285 = vmatpush.bf16.msra.mxu0 %v1872
    %2286 = vmatpush.bf16.msra.mxu0 %v1870
    %2287 = vmatmul.bf16.gmra.mxu0 %v1070
    %v2288 = vpop.f32.mrf.mxu0
    %v2289 = vadd.f32 %v2261, %v2288
    %v2290 = vpop.f32.mrf.mxu0
    %v2291 = vadd.f32 %v2263, %v2290
    %2292 = vmatmul.bf16.gmra.mxu0 %v1081
    %v2293 = vpop.f32.mrf.mxu0
    %v2294 = vadd.f32 %v2266, %v2293
    %v2295 = vpop.f32.mrf.mxu0
    %v2296 = vadd.f32 %v2268, %v2295
    %2297 = vmatmul.bf16.gmra.mxu0 %v1092
    %v2298 = vpop.f32.mrf.mxu0
    %v2299 = vadd.f32 %v2271, %v2298
    %v2300 = vpop.f32.mrf.mxu0
    %v2301 = vadd.f32 %v2273, %v2300
    %2302 = vmatmul.bf16.gmra.mxu0 %v1103
    %v2303 = vpop.f32.mrf.mxu0
    %v2304 = vadd.f32 %v2276, %v2303
    %v2305 = vpop.f32.mrf.mxu0
    %2306 = vdwg.mxu0
    %2307 = vmatpush.bf16.msra.mxu0 %v1900
    %2308 = vmatpush.bf16.msra.mxu0 %v1898
    %2309 = vmatpush.bf16.msra.mxu0 %v1896
    %2310 = vmatpush.bf16.msra.mxu0 %v1894
    %2311 = vmatpush.bf16.msra.mxu0 %v1892
    %2312 = vmatpush.bf16.msra.mxu0 %v1890
    %2313 = vmatpush.bf16.msra.mxu0 %v1888
    %2314 = vmatpush.bf16.msra.mxu0 %v1886
    %2315 = vmatmul.bf16.gmra.mxu0 %v1071
    %v2316 = vpop.f32.mrf.mxu0
    %v2317 = vadd.f32 %v2289, %v2316
    %v2318 = vpop.f32.mrf.mxu0
    %v2319 = vadd.f32 %v2291, %v2318
    %2320 = vmatmul.bf16.gmra.mxu0 %v1082
    %v2321 = vpop.f32.mrf.mxu0
    %v2322 = vadd.f32 %v2294, %v2321
    %v2323 = vpop.f32.mrf.mxu0
    %v2324 = vadd.f32 %v2296, %v2323
    %2325 = vmatmul.bf16.gmra.mxu0 %v1093
    %v2326 = vpop.f32.mrf.mxu0
    %v2327 = vadd.f32 %v2299, %v2326
    %v2328 = vpop.f32.mrf.mxu0
    %v2329 = vadd.f32 %v2301, %v2328
    %2330 = vmatmul.bf16.gmra.mxu0 %v1104
    %v2331 = vpop.f32.mrf.mxu0
    %v2332 = vadd.f32 %v2304, %v2331
    %v2333 = vpop.f32.mrf.mxu0
    %2334 = vdwg.mxu0
    %2335 = vmatpush.bf16.msra.mxu0 %v1916
    %2336 = vmatpush.bf16.msra.mxu0 %v1914
    %2337 = vmatpush.bf16.msra.mxu0 %v1912
    %2338 = vmatpush.bf16.msra.mxu0 %v1910
    %2339 = vmatpush.bf16.msra.mxu0 %v1908
    %2340 = vmatpush.bf16.msra.mxu0 %v1906
    %2341 = vmatpush.bf16.msra.mxu0 %v1904
    %2342 = vmatpush.bf16.msra.mxu0 %v1902
    %2343 = vmatmul.bf16.gmra.mxu0 %v1072
    %v2344 = vpop.f32.mrf.mxu0
    %v2345 = vadd.f32 %v2317, %v2344
    %v2346 = vpop.f32.mrf.mxu0
    %v2347 = vadd.f32 %v2319, %v2346
    %2348 = vmatmul.bf16.gmra.mxu0 %v1083
    %v2349 = vpop.f32.mrf.mxu0
    %v2350 = vadd.f32 %v2322, %v2349
    %v2351 = vpop.f32.mrf.mxu0
    %v2352 = vadd.f32 %v2324, %v2351
    %2353 = vmatmul.bf16.gmra.mxu0 %v1094
    %v2354 = vpop.f32.mrf.mxu0
    %v2355 = vadd.f32 %v2327, %v2354
    %v2356 = vpop.f32.mrf.mxu0
    %v2357 = vadd.f32 %v2329, %v2356
    %2358 = vmatmul.bf16.gmra.mxu0 %v1105
    %v2359 = vpop.f32.mrf.mxu0
    %v2360 = vadd.f32 %v2332, %v2359
    %v2361 = vpop.f32.mrf.mxu0
    %2362 = vdwg.mxu0
    %2363 = vmatpush.bf16.msra.mxu0 %v1932
    %2364 = vmatpush.bf16.msra.mxu0 %v1930
    %2365 = vmatpush.bf16.msra.mxu0 %v1928
    %2366 = vmatpush.bf16.msra.mxu0 %v1926
    %2367 = vmatpush.bf16.msra.mxu0 %v1924
    %2368 = vmatpush.bf16.msra.mxu0 %v1922
    %2369 = vmatpush.bf16.msra.mxu0 %v1920
    %2370 = vmatpush.bf16.msra.mxu0 %v1918
    %2371 = vmatmul.bf16.gmra.mxu0 %v1073
    %v2372 = vpop.f32.mrf.mxu0
    %v2373 = vadd.f32 %v2345, %v2372
    %v2374 = vpop.f32.mrf.mxu0
    %v2375 = vadd.f32 %v2347, %v2374
    %2376 = vmatmul.bf16.gmra.mxu0 %v1084
    %v2377 = vpop.f32.mrf.mxu0
    %v2378 = vadd.f32 %v2350, %v2377
    %v2379 = vpop.f32.mrf.mxu0
    %v2380 = vadd.f32 %v2352, %v2379
    %2381 = vmatmul.bf16.gmra.mxu0 %v1095
    %v2382 = vpop.f32.mrf.mxu0
    %v2383 = vadd.f32 %v2355, %v2382
    %v2384 = vpop.f32.mrf.mxu0
    %v2385 = vadd.f32 %v2357, %v2384
    %2386 = vmatmul.bf16.gmra.mxu0 %v1106
    %v2387 = vpop.f32.mrf.mxu0
    %v2388 = vadd.f32 %v2360, %v2387
    %v2389 = vpop.f32.mrf.mxu0
    %2390 = vdwg.mxu0
    %2391 = vmatpush.bf16.msra.mxu0 %v1948
    %2392 = vmatpush.bf16.msra.mxu0 %v1946
    %2393 = vmatpush.bf16.msra.mxu0 %v1944
    %2394 = vmatpush.bf16.msra.mxu0 %v1942
    %2395 = vmatpush.bf16.msra.mxu0 %v1940
    %2396 = vmatpush.bf16.msra.mxu0 %v1938
    %2397 = vmatpush.bf16.msra.mxu0 %v1936
    %2398 = vmatpush.bf16.msra.mxu0 %v1934
    %2399 = vmatmul.bf16.gmra.mxu0 %v1074
    %v2400 = vpop.f32.mrf.mxu0
    %v2401 = vadd.f32 %v2373, %v2400
    %v2402 = vpop.f32.mrf.mxu0
    %v2403 = vadd.f32 %v2375, %v2402
    %2404 = vmatmul.bf16.gmra.mxu0 %v1085
    %v2405 = vpop.f32.mrf.mxu0
    %v2406 = vadd.f32 %v2378, %v2405
    %v2407 = vpop.f32.mrf.mxu0
    %v2408 = vadd.f32 %v2380, %v2407
    %2409 = vmatmul.bf16.gmra.mxu0 %v1096
    %v2410 = vpop.f32.mrf.mxu0
    %v2411 = vadd.f32 %v2383, %v2410
    %v2412 = vpop.f32.mrf.mxu0
    %v2413 = vadd.f32 %v2385, %v2412
    %2414 = vmatmul.bf16.gmra.mxu0 %v1107
    %v2415 = vpop.f32.mrf.mxu0
    %v2416 = vadd.f32 %v2388, %v2415
    %v2417 = vpop.f32.mrf.mxu0
    %2418 = vdwg.mxu0
    %2419 = vmatpush.bf16.msra.mxu0 %v1964
    %2420 = vmatpush.bf16.msra.mxu0 %v1962
    %2421 = vmatpush.bf16.msra.mxu0 %v1960
    %2422 = vmatpush.bf16.msra.mxu0 %v1958
    %2423 = vmatpush.bf16.msra.mxu0 %v1956
    %2424 = vmatpush.bf16.msra.mxu0 %v1954
    %2425 = vmatpush.bf16.msra.mxu0 %v1952
    %2426 = vmatpush.bf16.msra.mxu0 %v1950
    %2427 = vmatmul.bf16.gmra.mxu0 %v1075
    %v2428 = vpop.f32.mrf.mxu0
    %v2429 = vadd.f32 %v2401, %v2428
    %v2430 = vpop.f32.mrf.mxu0
    %v2431 = vadd.f32 %v2403, %v2430
    %2432 = vmatmul.bf16.gmra.mxu0 %v1086
    %v2433 = vpop.f32.mrf.mxu0
    %v2434 = vadd.f32 %v2406, %v2433
    %v2435 = vpop.f32.mrf.mxu0
    %v2436 = vadd.f32 %v2408, %v2435
    %2437 = vmatmul.bf16.gmra.mxu0 %v1097
    %v2438 = vpop.f32.mrf.mxu0
    %v2439 = vadd.f32 %v2411, %v2438
    %v2440 = vpop.f32.mrf.mxu0
    %v2441 = vadd.f32 %v2413, %v2440
    %2442 = vmatmul.bf16.gmra.mxu0 %v1108
    %v2443 = vpop.f32.mrf.mxu0
    %v2444 = vadd.f32 %v2416, %v2443
    %v2445 = vpop.f32.mrf.mxu0
    %2446 = vdwg.mxu0
    %2447 = vmatpush.bf16.msra.mxu0 0
    %2448 = vmatpush.bf16.msra.mxu0 %v1978
    %2449 = vmatpush.bf16.msra.mxu0 %v1976
    %2450 = vmatpush.bf16.msra.mxu0 %v1974
    %2451 = vmatpush.bf16.msra.mxu0 %v1972
    %2452 = vmatpush.bf16.msra.mxu0 %v1970
    %2453 = vmatpush.bf16.msra.mxu0 %v1968
    %2454 = vmatpush.bf16.msra.mxu0 %v1966
    %2455 = vmatmul.bf16.gmra.mxu0 %v2156
    %v2456 = vpop.f32.mrf.mxu0
    %v2457 = vadd.f32 %v2429, %v2456
    %v2458 = vpop.f32.mrf.mxu0
    %v2459 = vadd.f32 %v2431, %v2458
    %2460 = vmatmul.bf16.gmra.mxu0 %v2159
    %v2461 = vpop.f32.mrf.mxu0
    %v2462 = vadd.f32 %v2434, %v2461
    %v2463 = vpop.f32.mrf.mxu0
    %v2464 = vadd.f32 %v2436, %v2463
    %2465 = vmatmul.bf16.gmra.mxu0 %v2162
    %v2466 = vpop.f32.mrf.mxu0
    %v2467 = vadd.f32 %v2439, %v2466
    %v2468 = vpop.f32.mrf.mxu0
    %v2469 = vadd.f32 %v2441, %v2468
    %2470 = vmatmul.bf16.gmra.mxu0 %v2165
    %v2471 = vpop.f32.mrf.mxu0
    %v2472 = vadd.f32 %v2444, %v2471
    %v2473 = vpop.f32.mrf.mxu0
    %2474 = vdwg.mxu0
    %2475 = vmatpush.bf16.msra.mxu0 %v1821
    %2476 = vmatpush.bf16.msra.mxu0 %v1819
    %2477 = vmatpush.bf16.msra.mxu0 %v1817
    %2478 = vmatpush.bf16.msra.mxu0 %v1815
    %2479 = vmatpush.bf16.msra.mxu0 %v1813
    %2480 = vmatpush.bf16.msra.mxu0 %v1811
    %2481 = vmatpush.bf16.msra.mxu0 %v1809
    %2482 = vmatpush.bf16.msra.mxu0 %v1807
    %2483 = vmatmul.bf16.gmra.mxu0 %v1066
    %v2484 = vpop.f32.mrf.mxu0
    %v2485 = vadd.f32 0.0, %v2484
    %v2486 = vpop.f32.mrf.mxu0
    %v2487 = vadd.f32 0.0, %v2486
    %2488 = vmatmul.bf16.gmra.mxu0 %v1077
    %v2489 = vpop.f32.mrf.mxu0
    %v2490 = vadd.f32 0.0, %v2489
    %v2491 = vpop.f32.mrf.mxu0
    %v2492 = vadd.f32 0.0, %v2491
    %2493 = vmatmul.bf16.gmra.mxu0 %v1088
    %v2494 = vpop.f32.mrf.mxu0
    %v2495 = vadd.f32 0.0, %v2494
    %v2496 = vpop.f32.mrf.mxu0
    %v2497 = vadd.f32 0.0, %v2496
    %2498 = vmatmul.bf16.gmra.mxu0 %v1099
    %v2499 = vpop.f32.mrf.mxu0
    %v2500 = vadd.f32 0.0, %v2499
    %v2501 = vpop.f32.mrf.mxu0
    %2502 = vdwg.mxu0
    %2503 = vmatpush.bf16.msra.mxu0 %v1837
    %2504 = vmatpush.bf16.msra.mxu0 %v1835
    %2505 = vmatpush.bf16.msra.mxu0 %v1833
    %2506 = vmatpush.bf16.msra.mxu0 %v1831
    %2507 = vmatpush.bf16.msra.mxu0 %v1829
    %2508 = vmatpush.bf16.msra.mxu0 %v1827
    %2509 = vmatpush.bf16.msra.mxu0 %v1825
    %2510 = vmatpush.bf16.msra.mxu0 %v1823
    %2511 = vmatmul.bf16.gmra.mxu0 %v1067
    %v2512 = vpop.f32.mrf.mxu0
    %v2513 = vadd.f32 %v2485, %v2512
    %v2514 = vpop.f32.mrf.mxu0
    %v2515 = vadd.f32 %v2487, %v2514
    %2516 = vmatmul.bf16.gmra.mxu0 %v1078
    %v2517 = vpop.f32.mrf.mxu0
    %v2518 = vadd.f32 %v2490, %v2517
    %v2519 = vpop.f32.mrf.mxu0
    %v2520 = vadd.f32 %v2492, %v2519
    %2521 = vmatmul.bf16.gmra.mxu0 %v1089
    %v2522 = vpop.f32.mrf.mxu0
    %v2523 = vadd.f32 %v2495, %v2522
    %v2524 = vpop.f32.mrf.mxu0
    %v2525 = vadd.f32 %v2497, %v2524
    %2526 = vmatmul.bf16.gmra.mxu0 %v1100
    %v2527 = vpop.f32.mrf.mxu0
    %v2528 = vadd.f32 %v2500, %v2527
    %v2529 = vpop.f32.mrf.mxu0
    %2530 = vdwg.mxu0
    %2531 = vmatpush.bf16.msra.mxu0 %v1853
    %2532 = vmatpush.bf16.msra.mxu0 %v1851
    %2533 = vmatpush.bf16.msra.mxu0 %v1849
    %2534 = vmatpush.bf16.msra.mxu0 %v1847
    %2535 = vmatpush.bf16.msra.mxu0 %v1845
    %2536 = vmatpush.bf16.msra.mxu0 %v1843
    %2537 = vmatpush.bf16.msra.mxu0 %v1841
    %2538 = vmatpush.bf16.msra.mxu0 %v1839
    %2539 = vmatmul.bf16.gmra.mxu0 %v1068
    %v2540 = vpop.f32.mrf.mxu0
    %v2541 = vadd.f32 %v2513, %v2540
    %v2542 = vpop.f32.mrf.mxu0
    %v2543 = vadd.f32 %v2515, %v2542
    %2544 = vmatmul.bf16.gmra.mxu0 %v1079
    %v2545 = vpop.f32.mrf.mxu0
    %v2546 = vadd.f32 %v2518, %v2545
    %v2547 = vpop.f32.mrf.mxu0
    %v2548 = vadd.f32 %v2520, %v2547
    %2549 = vmatmul.bf16.gmra.mxu0 %v1090
    %v2550 = vpop.f32.mrf.mxu0
    %v2551 = vadd.f32 %v2523, %v2550
    %v2552 = vpop.f32.mrf.mxu0
    %v2553 = vadd.f32 %v2525, %v2552
    %2554 = vmatmul.bf16.gmra.mxu0 %v1101
    %v2555 = vpop.f32.mrf.mxu0
    %v2556 = vadd.f32 %v2528, %v2555
    %v2557 = vpop.f32.mrf.mxu0
    %2558 = vdwg.mxu0
    %2559 = vmatpush.bf16.msra.mxu0 %v1869
    %2560 = vmatpush.bf16.msra.mxu0 %v1867
    %2561 = vmatpush.bf16.msra.mxu0 %v1865
    %2562 = vmatpush.bf16.msra.mxu0 %v1863
    %2563 = vmatpush.bf16.msra.mxu0 %v1861
    %2564 = vmatpush.bf16.msra.mxu0 %v1859
    %2565 = vmatpush.bf16.msra.mxu0 %v1857
    %2566 = vmatpush.bf16.msra.mxu0 %v1855
    %2567 = vmatmul.bf16.gmra.mxu0 %v1069
    %v2568 = vpop.f32.mrf.mxu0
    %v2569 = vadd.f32 %v2541, %v2568
    %v2570 = vpop.f32.mrf.mxu0
    %v2571 = vadd.f32 %v2543, %v2570
    %2572 = vmatmul.bf16.gmra.mxu0 %v1080
    %v2573 = vpop.f32.mrf.mxu0
    %v2574 = vadd.f32 %v2546, %v2573
    %v2575 = vpop.f32.mrf.mxu0
    %v2576 = vadd.f32 %v2548, %v2575
    %2577 = vmatmul.bf16.gmra.mxu0 %v1091
    %v2578 = vpop.f32.mrf.mxu0
    %v2579 = vadd.f32 %v2551, %v2578
    %v2580 = vpop.f32.mrf.mxu0
    %v2581 = vadd.f32 %v2553, %v2580
    %2582 = vmatmul.bf16.gmra.mxu0 %v1102
    %v2583 = vpop.f32.mrf.mxu0
    %v2584 = vadd.f32 %v2556, %v2583
    %v2585 = vpop.f32.mrf.mxu0
    %2586 = vdwg.mxu0
    %2587 = vmatpush.bf16.msra.mxu0 %v1885
    %2588 = vmatpush.bf16.msra.mxu0 %v1883
    %2589 = vmatpush.bf16.msra.mxu0 %v1881
    %2590 = vmatpush.bf16.msra.mxu0 %v1879
    %2591 = vmatpush.bf16.msra.mxu0 %v1877
    %2592 = vmatpush.bf16.msra.mxu0 %v1875
    %2593 = vmatpush.bf16.msra.mxu0 %v1873
    %2594 = vmatpush.bf16.msra.mxu0 %v1871
    %2595 = vmatmul.bf16.gmra.mxu0 %v1070
    %v2596 = vpop.f32.mrf.mxu0
    %v2597 = vadd.f32 %v2569, %v2596
    %v2598 = vpop.f32.mrf.mxu0
    %v2599 = vadd.f32 %v2571, %v2598
    %2600 = vmatmul.bf16.gmra.mxu0 %v1081
    %v2601 = vpop.f32.mrf.mxu0
    %v2602 = vadd.f32 %v2574, %v2601
    %v2603 = vpop.f32.mrf.mxu0
    %v2604 = vadd.f32 %v2576, %v2603
    %2605 = vmatmul.bf16.gmra.mxu0 %v1092
    %v2606 = vpop.f32.mrf.mxu0
    %v2607 = vadd.f32 %v2579, %v2606
    %v2608 = vpop.f32.mrf.mxu0
    %v2609 = vadd.f32 %v2581, %v2608
    %2610 = vmatmul.bf16.gmra.mxu0 %v1103
    %v2611 = vpop.f32.mrf.mxu0
    %v2612 = vadd.f32 %v2584, %v2611
    %v2613 = vpop.f32.mrf.mxu0
    %2614 = vdwg.mxu0
    %2615 = vmatpush.bf16.msra.mxu0 %v1901
    %2616 = vmatpush.bf16.msra.mxu0 %v1899
    %2617 = vmatpush.bf16.msra.mxu0 %v1897
    %2618 = vmatpush.bf16.msra.mxu0 %v1895
    %2619 = vmatpush.bf16.msra.mxu0 %v1893
    %2620 = vmatpush.bf16.msra.mxu0 %v1891
    %2621 = vmatpush.bf16.msra.mxu0 %v1889
    %2622 = vmatpush.bf16.msra.mxu0 %v1887
    %2623 = vmatmul.bf16.gmra.mxu0 %v1071
    %v2624 = vpop.f32.mrf.mxu0
    %v2625 = vadd.f32 %v2597, %v2624
    %v2626 = vpop.f32.mrf.mxu0
    %v2627 = vadd.f32 %v2599, %v2626
    %2628 = vmatmul.bf16.gmra.mxu0 %v1082
    %v2629 = vpop.f32.mrf.mxu0
    %v2630 = vadd.f32 %v2602, %v2629
    %v2631 = vpop.f32.mrf.mxu0
    %v2632 = vadd.f32 %v2604, %v2631
    %2633 = vmatmul.bf16.gmra.mxu0 %v1093
    %v2634 = vpop.f32.mrf.mxu0
    %v2635 = vadd.f32 %v2607, %v2634
    %v2636 = vpop.f32.mrf.mxu0
    %v2637 = vadd.f32 %v2609, %v2636
    %2638 = vmatmul.bf16.gmra.mxu0 %v1104
    %v2639 = vpop.f32.mrf.mxu0
    %v2640 = vadd.f32 %v2612, %v2639
    %v2641 = vpop.f32.mrf.mxu0
    %2642 = vdwg.mxu0
    %2643 = vmatpush.bf16.msra.mxu0 %v1917
    %2644 = vmatpush.bf16.msra.mxu0 %v1915
    %2645 = vmatpush.bf16.msra.mxu0 %v1913
    %2646 = vmatpush.bf16.msra.mxu0 %v1911
    %2647 = vmatpush.bf16.msra.mxu0 %v1909
    %2648 = vmatpush.bf16.msra.mxu0 %v1907
    %2649 = vmatpush.bf16.msra.mxu0 %v1905
    %2650 = vmatpush.bf16.msra.mxu0 %v1903
    %2651 = vmatmul.bf16.gmra.mxu0 %v1072
    %v2652 = vpop.f32.mrf.mxu0
    %v2653 = vadd.f32 %v2625, %v2652
    %v2654 = vpop.f32.mrf.mxu0
    %v2655 = vadd.f32 %v2627, %v2654
    %2656 = vmatmul.bf16.gmra.mxu0 %v1083
    %v2657 = vpop.f32.mrf.mxu0
    %v2658 = vadd.f32 %v2630, %v2657
    %v2659 = vpop.f32.mrf.mxu0
    %v2660 = vadd.f32 %v2632, %v2659
    %2661 = vmatmul.bf16.gmra.mxu0 %v1094
    %v2662 = vpop.f32.mrf.mxu0
    %v2663 = vadd.f32 %v2635, %v2662
    %v2664 = vpop.f32.mrf.mxu0
    %v2665 = vadd.f32 %v2637, %v2664
    %2666 = vmatmul.bf16.gmra.mxu0 %v1105
    %v2667 = vpop.f32.mrf.mxu0
    %v2668 = vadd.f32 %v2640, %v2667
    %v2669 = vpop.f32.mrf.mxu0
    %2670 = vdwg.mxu0
    %2671 = vmatpush.bf16.msra.mxu0 %v1933
    %2672 = vmatpush.bf16.msra.mxu0 %v1931
    %2673 = vmatpush.bf16.msra.mxu0 %v1929
    %2674 = vmatpush.bf16.msra.mxu0 %v1927
    %2675 = vmatpush.bf16.msra.mxu0 %v1925
    %2676 = vmatpush.bf16.msra.mxu0 %v1923
    %2677 = vmatpush.bf16.msra.mxu0 %v1921
    %2678 = vmatpush.bf16.msra.mxu0 %v1919
    %2679 = vmatmul.bf16.gmra.mxu0 %v1073
    %v2680 = vpop.f32.mrf.mxu0
    %v2681 = vadd.f32 %v2653, %v2680
    %v2682 = vpop.f32.mrf.mxu0
    %v2683 = vadd.f32 %v2655, %v2682
    %2684 = vmatmul.bf16.gmra.mxu0 %v1084
    %v2685 = vpop.f32.mrf.mxu0
    %v2686 = vadd.f32 %v2658, %v2685
    %v2687 = vpop.f32.mrf.mxu0
    %v2688 = vadd.f32 %v2660, %v2687
    %2689 = vmatmul.bf16.gmra.mxu0 %v1095
    %v2690 = vpop.f32.mrf.mxu0
    %v2691 = vadd.f32 %v2663, %v2690
    %v2692 = vpop.f32.mrf.mxu0
    %v2693 = vadd.f32 %v2665, %v2692
    %2694 = vmatmul.bf16.gmra.mxu0 %v1106
    %v2695 = vpop.f32.mrf.mxu0
    %v2696 = vadd.f32 %v2668, %v2695
    %v2697 = vpop.f32.mrf.mxu0
    %2698 = vdwg.mxu0
    %2699 = vmatpush.bf16.msra.mxu0 %v1949
    %2700 = vmatpush.bf16.msra.mxu0 %v1947
    %2701 = vmatpush.bf16.msra.mxu0 %v1945
    %2702 = vmatpush.bf16.msra.mxu0 %v1943
    %2703 = vmatpush.bf16.msra.mxu0 %v1941
    %2704 = vmatpush.bf16.msra.mxu0 %v1939
    %2705 = vmatpush.bf16.msra.mxu0 %v1937
    %2706 = vmatpush.bf16.msra.mxu0 %v1935
    %2707 = vmatmul.bf16.gmra.mxu0 %v1074
    %v2708 = vpop.f32.mrf.mxu0
    %v2709 = vadd.f32 %v2681, %v2708
    %v2710 = vpop.f32.mrf.mxu0
    %v2711 = vadd.f32 %v2683, %v2710
    %2712 = vmatmul.bf16.gmra.mxu0 %v1085
    %v2713 = vpop.f32.mrf.mxu0
    %v2714 = vadd.f32 %v2686, %v2713
    %v2715 = vpop.f32.mrf.mxu0
    %v2716 = vadd.f32 %v2688, %v2715
    %2717 = vmatmul.bf16.gmra.mxu0 %v1096
    %v2718 = vpop.f32.mrf.mxu0
    %v2719 = vadd.f32 %v2691, %v2718
    %v2720 = vpop.f32.mrf.mxu0
    %v2721 = vadd.f32 %v2693, %v2720
    %2722 = vmatmul.bf16.gmra.mxu0 %v1107
    %v2723 = vpop.f32.mrf.mxu0
    %v2724 = vadd.f32 %v2696, %v2723
    %v2725 = vpop.f32.mrf.mxu0
    %2726 = vdwg.mxu0
    %2727 = vmatpush.bf16.msra.mxu0 %v1965
    %2728 = vmatpush.bf16.msra.mxu0 %v1963
    %2729 = vmatpush.bf16.msra.mxu0 %v1961
    %2730 = vmatpush.bf16.msra.mxu0 %v1959
    %2731 = vmatpush.bf16.msra.mxu0 %v1957
    %2732 = vmatpush.bf16.msra.mxu0 %v1955
    %2733 = vmatpush.bf16.msra.mxu0 %v1953
    %2734 = vmatpush.bf16.msra.mxu0 %v1951
    %2735 = vmatmul.bf16.gmra.mxu0 %v1075
    %v2736 = vpop.f32.mrf.mxu0
    %v2737 = vadd.f32 %v2709, %v2736
    %v2738 = vpop.f32.mrf.mxu0
    %v2739 = vadd.f32 %v2711, %v2738
    %2740 = vmatmul.bf16.gmra.mxu0 %v1086
    %v2741 = vpop.f32.mrf.mxu0
    %v2742 = vadd.f32 %v2714, %v2741
    %v2743 = vpop.f32.mrf.mxu0
    %v2744 = vadd.f32 %v2716, %v2743
    %2745 = vmatmul.bf16.gmra.mxu0 %v1097
    %v2746 = vpop.f32.mrf.mxu0
    %v2747 = vadd.f32 %v2719, %v2746
    %v2748 = vpop.f32.mrf.mxu0
    %v2749 = vadd.f32 %v2721, %v2748
    %2750 = vmatmul.bf16.gmra.mxu0 %v1108
    %v2751 = vpop.f32.mrf.mxu0
    %v2752 = vadd.f32 %v2724, %v2751
    %v2753 = vpop.f32.mrf.mxu0
    %2754 = vdwg.mxu0
    %2755 = vmatpush.bf16.msra.mxu0 0
    %2756 = vmatpush.bf16.msra.mxu0 %v1979
    %2757 = vmatpush.bf16.msra.mxu0 %v1977
    %2758 = vmatpush.bf16.msra.mxu0 %v1975
    %2759 = vmatpush.bf16.msra.mxu0 %v1973
    %2760 = vmatpush.bf16.msra.mxu0 %v1971
    %2761 = vmatpush.bf16.msra.mxu0 %v1969
    %2762 = vmatpush.bf16.msra.mxu0 %v1967
    %2763 = vmatmul.bf16.gmra.mxu0 %v2156
    %v2764 = vpop.f32.mrf.mxu0
    %v2765 = vadd.f32 %v2737, %v2764
    %v2766 = vpop.f32.mrf.mxu0
    %v2767 = vadd.f32 %v2739, %v2766
    %2768 = vmatmul.bf16.gmra.mxu0 %v2159
    %v2769 = vpop.f32.mrf.mxu0
    %v2770 = vadd.f32 %v2742, %v2769
    %v2771 = vpop.f32.mrf.mxu0
    %v2772 = vadd.f32 %v2744, %v2771
    %2773 = vmatmul.bf16.gmra.mxu0 %v2162
    %v2774 = vpop.f32.mrf.mxu0
    %v2775 = vadd.f32 %v2747, %v2774
    %v2776 = vpop.f32.mrf.mxu0
    %v2777 = vadd.f32 %v2749, %v2776
    %2778 = vmatmul.bf16.gmra.mxu0 %v2165
    %v2779 = vpop.f32.mrf.mxu0
    %v2780 = vadd.f32 %v2752, %v2779
    %v2781 = vpop.f32.mrf.mxu0
    %2782 = vdwg.mxu0
    %v2783 = vadd.f32 %v2457, %v2459
    %v2784 = vadd.f32 %v2783, %v2462
    %v2785 = vadd.f32 %v2784, %v2464
    %v2786 = vadd.f32 %v2785, %v2467
    %v2787 = vadd.f32 %v2786, %v2469
    %v2788 = vadd.f32 %v2787, %v2472
    %v2789 = vrot.slane %v2788, 4
    %v2790 = vadd.f32 %v2788, %v2789
    %v2791 = vrot.slane %v2790, 2
    %v2792 = vadd.f32 %v2790, %v2791
    %v2793 = vrot.slane %v2792, 1
    %v2794 = vadd.f32 %v2792, %v2793
    %v2795 = vadd.f32 %v2765, %v2767
    %v2796 = vadd.f32 %v2795, %v2770
    %v2797 = vadd.f32 %v2796, %v2772
    %v2798 = vadd.f32 %v2797, %v2775
    %v2799 = vadd.f32 %v2798, %v2777
    %v2800 = vadd.f32 %v2799, %v2780
    %v2801 = vrot.slane %v2800, 4
    %v2802 = vadd.f32 %v2800, %v2801
    %v2803 = vrot.slane %v2802, 2
    %v2804 = vadd.f32 %v2802, %v2803
    %v2805 = vrot.slane %v2804, 1
    %v2806 = vadd.f32 %v2804, %v2805
    %v2807 = vmul.f32 %v2794, 0.020408163
    %v2808 = vmul.f32 %v2806, 0.020408163
    %v2809 = vsub.f32 %v2457, %v2807
    %v2810 = vsub.f32 %v2765, %v2808
    %v2811 = vsub.f32 %v2459, %v2807
    %v2812 = vsub.f32 %v2767, %v2808
    %v2813 = vsub.f32 %v2462, %v2807
    %v2814 = vsub.f32 %v2770, %v2808
    %v2815 = vsub.f32 %v2464, %v2807
    %v2816 = vsub.f32 %v2772, %v2808
    %v2817 = vsub.f32 %v2467, %v2807
    %v2818 = vsub.f32 %v2775, %v2808
    %v2819 = vsub.f32 %v2469, %v2807
    %v2820 = vsub.f32 %v2777, %v2808
    %v2821 = vsub.f32 %v2472, %v2807
    %v2822 = vsub.f32 %v2780, %v2808
    %v2823 = vlaneseq
    %v2824 = vshrl.u32 %v2823, 7
    %v2825 = vadd.s32 %v2824, 8
    %v2826 = vadd.s32 %v2824, 16
    %v2827 = vadd.s32 %v2824, 24
    %v2828 = vadd.s32 %v2824, 32
    %v2829 = vadd.s32 %v2824, 40
    %v2830 = vadd.s32 %v2824, 48
    %vm2831 = vcmp.lt.s32.totalorder %v2824, 49
    %vm2832 = vcmp.lt.s32.totalorder %v2825, 49
    %vm2833 = vcmp.lt.s32.totalorder %v2826, 49
    %vm2834 = vcmp.lt.s32.totalorder %v2827, 49
    %vm2835 = vcmp.lt.s32.totalorder %v2828, 49
    %vm2836 = vcmp.lt.s32.totalorder %v2829, 49
    %vm2837 = vcmp.lt.s32.totalorder %v2830, 49
    %v2838 = vsel %vm2831, %v2809, 0.0
    %v2839 = vsel %vm2831, %v2810, 0.0
    %v2840 = vsel %vm2832, %v2811, 0.0
    %v2841 = vsel %vm2832, %v2812, 0.0
    %v2842 = vsel %vm2833, %v2813, 0.0
    %v2843 = vsel %vm2833, %v2814, 0.0
    %v2844 = vsel %vm2834, %v2815, 0.0
    %v2845 = vsel %vm2834, %v2816, 0.0
    %v2846 = vsel %vm2835, %v2817, 0.0
    %v2847 = vsel %vm2835, %v2818, 0.0
    %v2848 = vsel %vm2836, %v2819, 0.0
    %v2849 = vsel %vm2836, %v2820, 0.0
    %v2850 = vsel %vm2837, %v2821, 0.0
    %v2851 = vsel %vm2837, %v2822, 0.0
    %v2852 = vmul.f32 %v2838, %v2838
    %v2853 = vmul.f32 %v2839, %v2839
    %v2854 = vmul.f32 %v2840, %v2840
    %v2855 = vmul.f32 %v2841, %v2841
    %v2856 = vmul.f32 %v2842, %v2842
    %v2857 = vmul.f32 %v2843, %v2843
    %v2858 = vmul.f32 %v2844, %v2844
    %v2859 = vmul.f32 %v2845, %v2845
    %v2860 = vmul.f32 %v2846, %v2846
    %v2861 = vmul.f32 %v2847, %v2847
    %v2862 = vmul.f32 %v2848, %v2848
    %v2863 = vmul.f32 %v2849, %v2849
    %v2864 = vmul.f32 %v2850, %v2850
    %v2865 = vmul.f32 %v2851, %v2851
    %v2866 = vadd.f32 %v2852, %v2854
    %v2867 = vadd.f32 %v2866, %v2856
    %v2868 = vadd.f32 %v2867, %v2858
    %v2869 = vadd.f32 %v2868, %v2860
    %v2870 = vadd.f32 %v2869, %v2862
    %v2871 = vadd.f32 %v2870, %v2864
    %v2872 = vrot.slane %v2871, 4
    %v2873 = vadd.f32 %v2871, %v2872
    %v2874 = vrot.slane %v2873, 2
    %v2875 = vadd.f32 %v2873, %v2874
    %v2876 = vrot.slane %v2875, 1
    %v2877 = vadd.f32 %v2875, %v2876
    %v2878 = vadd.f32 %v2853, %v2855
    %v2879 = vadd.f32 %v2878, %v2857
    %v2880 = vadd.f32 %v2879, %v2859
    %v2881 = vadd.f32 %v2880, %v2861
    %v2882 = vadd.f32 %v2881, %v2863
    %v2883 = vadd.f32 %v2882, %v2865
    %v2884 = vrot.slane %v2883, 4
    %v2885 = vadd.f32 %v2883, %v2884
    %v2886 = vrot.slane %v2885, 2
    %v2887 = vadd.f32 %v2885, %v2886
    %v2888 = vrot.slane %v2887, 1
    %v2889 = vadd.f32 %v2887, %v2888
    %v2890 = vmul.f32 %v2877, 0.020408163
    %v2891 = vmul.f32 %v2889, 0.020408163
    %v2892 = vld [vmem:[%s5] sm:$0x3]
    %v2893 = vadd.f32 %v2890, 1e-05
    %v2894 = vadd.f32 %v2891, 1e-05
    %v2895 = vrsqrt.pop %v2893
    %v2896 = vmul.f32 %v2895, %v2893
    %v2897 = vmul.f32 %v2896, %v2895
    %v2898 = vmul.f32 0.5, %v2897
    %v2899 = vsub.f32 1.5, %v2898
    %v2900 = vmul.f32 %v2895, %v2899
    %vm2901 = vweird.f32 %v2893
    %vm2902 = vweird.f32 %v2895
    %vm2903 = vmor %vm2901, %vm2902
    %v2904 = vsel %vm2903, %v2895, %v2900
    %v2905 = vrsqrt.pop %v2894
    %v2906 = vmul.f32 %v2905, %v2894
    %v2907 = vmul.f32 %v2906, %v2905
    %v2908 = vmul.f32 0.5, %v2907
    %v2909 = vsub.f32 1.5, %v2908
    %v2910 = vmul.f32 %v2905, %v2909
    %vm2911 = vweird.f32 %v2894
    %vm2912 = vweird.f32 %v2905
    %vm2913 = vmor %vm2911, %vm2912
    %v2914 = vsel %vm2913, %v2905, %v2910
    %v2917 = vrot.slane %v2914, 7
    %vm2918 = vcmask 1040384
    %v2919 = vsel %vm2918, %v2904, %v2917
    %v2921 = vmul.f32 %v2892, %v2919
    %v2922 = vld [vmem:[%s6] sm:$0x3]
    %v2924 = vperm.slane %v2921, 0
    %v2925 = vperm.slane %v2921, 1
    %v2928 = vmul.f32 %v2807, %v2924
    %v2929 = vmul.f32 %v2808, %v2925
    %v2932 = vrot.slane %v2929, 7
    %v2933 = vsel %vm2918, %v2928, %v2932
    %v2935 = vsub.f32 %v2922, %v2933
    %v2936 = vmul.f32 %v2457, %v2924
    %v2937 = vmul.f32 %v2765, %v2925
    %v2938 = vmul.f32 %v2459, %v2924
    %v2939 = vmul.f32 %v2767, %v2925
    %v2940 = vmul.f32 %v2462, %v2924
    %v2941 = vmul.f32 %v2770, %v2925
    %v2942 = vmul.f32 %v2464, %v2924
    %v2943 = vmul.f32 %v2772, %v2925
    %v2944 = vmul.f32 %v2467, %v2924
    %v2945 = vmul.f32 %v2775, %v2925
    %v2946 = vmul.f32 %v2469, %v2924
    %v2947 = vmul.f32 %v2777, %v2925
    %v2948 = vmul.f32 %v2472, %v2924
    %v2949 = vmul.f32 %v2780, %v2925
    %v2951 = vperm.slane %v2935, 0
    %v2952 = vperm.slane %v2935, 1
    %v2955 = vadd.f32 %v2936, %v2951
    %v2956 = vadd.f32 %v2937, %v2952
    %v2957 = vadd.f32 %v2938, %v2951
    %v2958 = vadd.f32 %v2939, %v2952
    %v2959 = vadd.f32 %v2940, %v2951
    %v2960 = vadd.f32 %v2941, %v2952
    %v2961 = vadd.f32 %v2942, %v2951
    %v2962 = vadd.f32 %v2943, %v2952
    %v2963 = vadd.f32 %v2944, %v2951
    %v2964 = vadd.f32 %v2945, %v2952
    %v2965 = vadd.f32 %v2946, %v2951
    %v2966 = vadd.f32 %v2947, %v2952
    %v2967 = vadd.f32 %v2948, %v2951
    %v2968 = vadd.f32 %v2949, %v2952
    %2969 = vst [vmem:[#allocation11] sm:$0xff] %v2955
    %2970 = vst [vmem:[#allocation11 + $0x8] sm:$0xff] %v2956
    %2971 = vst [vmem:[#allocation11 + $0x10] sm:$0xff] %v2957
    %2972 = vst [vmem:[#allocation11 + $0x18] sm:$0xff] %v2958
    %2973 = vst [vmem:[#allocation11 + $0x20] sm:$0xff] %v2959
    %2974 = vst [vmem:[#allocation11 + $0x28] sm:$0xff] %v2960
    %2975 = vst [vmem:[#allocation11 + $0x30] sm:$0xff] %v2961
    %2976 = vst [vmem:[#allocation11 + $0x38] sm:$0xff] %v2962
    %2977 = vst [vmem:[#allocation11 + $0x40] sm:$0xff] %v2963
    %2978 = vst [vmem:[#allocation11 + $0x48] sm:$0xff] %v2964
    %2979 = vst [vmem:[#allocation11 + $0x50] sm:$0xff] %v2965
    %2980 = vst [vmem:[#allocation11 + $0x58] sm:$0xff] %v2966
    %2981 = vst [vmem:[#allocation11 + $0x60] sm:$0xff] %v2967
    %2982 = vst [vmem:[#allocation11 + $0x68] sm:$0xff] %v2968
    // Predicated region
    $region50: #{tpu_custom_call.1} parent=1 // pred_check
      _
    $region51: #{tpu_custom_call.1} parent=1 // pred_check_branch
      %2984 = sbr.rel (0) target = $region53
    $region52: #{tpu_custom_call.1} parent=1 // pred_region
      %2986 = vsyncadd [#allocation4], 0
      %s2987 = sshll.u32 [#allocation11], 4
      %s2988 = int_to_ptr.vmem [resolvable:$true] %s2987
      %s2989 = sshll.u32 %s7, 4
      %s2990 = int_to_ptr.hbm [resolvable:$true] %s2989
      %2995 = dma.vmem_to_hbm [thread:$0]  %s2988, 1792, %s2990, [#allocation4], 256, 256, 16
    $region53: #{tpu_custom_call.1} parent=1 // pred_fallthru
      _
    // Predicated region
    $region54: #{tpu_custom_call.1} parent=1 // pred_check
      _
    $region55: #{tpu_custom_call.1} parent=1 // pred_check_branch
      %2997 = sbr.rel (0) target = $region57
    $region56: #{tpu_custom_call.1} parent=1 // pred_region
      %2999 = dma.done [#allocation4], 1792
    $region57: #{tpu_custom_call.1} parent=1 // pred_fallthru
      _
    %3000 = vsyncpa [#allocation3], 1
    %3001 = vsyncpa [#allocation6], 1
    %3002 = vsyncpa [#allocation9], 1
    %3003 = vsyncpa [#allocation4], 1

</llo_original>
